<compile_context>
chip_gen: v7x
topology: tpu7x:2x2x1
jax: 0.10.0
libtpu: 0.0.40
codegen_flags: <defaults>
</compile_context>

<pallas_src>
import math
import functools

import jax
import jax.numpy as jnp
from jax import lax
from jax.experimental import pallas as pl
from jax.experimental.pallas import tpu as pltpu


# ----------------------------------------------------------------------------
# Structuring-element construction (tiny C*k*k tensors; plain JAX glue)
# ----------------------------------------------------------------------------
def get_y(size: int) -> jnp.ndarray:
    ii, jj = jnp.meshgrid(jnp.arange(size), jnp.arange(size), indexing="ij")
    coords = jnp.stack([ii, jj], axis=-1).astype(jnp.float32)            # [k,k,2]
    origin = jnp.array([size // 2, size // 2], dtype=jnp.float32)
    return coords - origin


def get_norm(y: jnp.ndarray, D: jnp.ndarray) -> jnp.ndarray:
    v = jnp.einsum("cij,hwj->chwi", D, y)                                # [C,k,k,2]
    return jnp.linalg.norm(v, axis=-1)                                   # [C,k,k]


def get_value(y: jnp.ndarray, alpha: float, t: float) -> jnp.ndarray:
    if alpha == 0.5:
        return jnp.where(y <= t, 0.0, jnp.inf).astype(jnp.float32)
    p = 2.0 * alpha / (2.0 * alpha - 1.0)
    const = t * (2.0 * alpha - 1.0) / math.pow(2.0 * alpha * t, p)
    return (const * jnp.power(y, p)).astype(jnp.float32)


# ----------------------------------------------------------------------------
# Host-side tiling helpers
# ----------------------------------------------------------------------------
def _round_up(x: int, m: int) -> int:
    return ((x + m - 1) // m) * m


def _vmem_caps():
    """(per-step VMEM budget, vmem_limit_bytes), tuned per TPU generation."""
    cap = None
    try:
        cap = int(pltpu.get_tpu_info().vmem_capacity_bytes)
    except Exception:
        cap = None
    if cap is None:
        try:
            kind = jax.devices()[0].device_kind.lower()
        except Exception:
            kind = ""
        cap = (64 << 20) if "7" in kind else (128 << 20)   # v7x has 64 MiB / TC
    budget = max(16 << 20, int(cap * 0.35))                 # ~22 MiB v7x, ~45 MiB v5e/v6e
    limit = max(32 << 20, min(int(cap * 0.75), 100 << 20))  # ~48 MiB v7x, ~96 MiB v5e/v6e
    return budget, limit


def _pick_cb(C: int, seg: int, lane_target: int = 512) -> int:
    """Largest divisor of C whose packed lane width Cb*seg stays <= lane_target."""
    best = 1
    for d in range(1, C + 1):
        if C % d == 0 and d * seg <= lane_target:
            best = d
    return best


def _pick_bb(B: int, per_batch_bytes: int, budget_bytes: int, cap: int = 8) -> int:
    bb = max(1, min(B, budget_bytes // max(per_batch_bytes, 1), cap))
    while B % bb:
        bb -= 1
    return bb


def _pick_sh(H: int, lanes: int) -> int:
    # Strip height such that the accumulator (SH rows) and the per-dw column
    # strip (SH+k-1 rows) comfortably stay register resident.
    sh = 16 if lanes * 16 * 4 <= 32 * 1024 else 8
    return min(H, sh)


# ----------------------------------------------------------------------------
# In-kernel min-plus reduction over register-resident H-strips
# ----------------------------------------------------------------------------
def _minplus_strips(load, store, tap, *, H, k, SH, Bb):
    """Shared inf-convolution inner loops.

    load(bb, r0, nrows, dw) -> (nrows, L) strip of the zero-padded source,
                               lane-shifted by dw.
    store(bb, r0, sh, acc)  -> write sh output rows starting at r0.
    tap(dh, dw)             -> structuring-element value (scalar or (1, L) row).

    The k*k reduction runs on an (SH, L) strip so `acc` and the per-dw column
    strip stay in vregs; only the single per-strip store touches VMEM.
    """
    n_full = H // SH
    tail = H - n_full * SH

    def do_strip(bb, r0, sh):
        acc = None
        for dw in range(k):
            # One lane shift per column offset; dh only moves the sublane slice.
            # TODO(synk): on v7x, consider a full-width load + pltpu.roll (XLU
            # slot) instead of the unaligned dw lane-slice once loads bind.
            col = load(bb, r0, sh + k - 1, dw)
            for dh in range(k):
                win = col[dh:dh + sh, :] + tap(dh, dw)
                acc = win if acc is None else jnp.minimum(acc, win)
        store(bb, r0, sh, acc)

    for bb in range(Bb):
        if n_full > 0:
            if n_full <= 8:                      # short: unroll for LLO visibility
                for s in range(n_full):
                    do_strip(bb, s * SH, SH)
            else:                                # long: bound code size
                def body(s, carry):
                    do_strip(bb, pl.multiple_of(s * SH, SH), SH)
                    return carry
                lax.fori_loop(0, n_full, body, 0)
        if tail:
            do_strip(bb, n_full * SH, tail)


# ----------------------------------------------------------------------------
# Kernels
# ----------------------------------------------------------------------------
def _erosion_kernel_packed(taps_ref, x_ref, o_ref, *, k, H, SH, L_out, Bb):
    # taps_ref : VMEM (1, k*k, L_out)    per-lane structuring-element rows
    # x_ref    : VMEM (Bb, 1, Hp, L_in)  zero-padded, channel-packed planes
    # o_ref    : VMEM (Bb, 1, H,  L_out) lane-dense output slab
    def load(bb, r0, nrows, dw):
        return x_ref[bb, 0, pl.ds(r0, nrows), dw:dw + L_out]

    def store(bb, r0, sh, acc):
        o_ref[bb, 0, pl.ds(r0, sh), :] = acc.astype(o_ref.dtype)

    def tap(dh, dw):
        t = dh * k + dw
        return taps_ref[0, t:t + 1, :]            # (1, L_out) row, broadcasts over rows

    _minplus_strips(load, store, tap, H=H, k=k, SH=SH, Bb=Bb)


def _erosion_kernel_direct(ker_ref, x_ref, o_ref, pad_ref, *, H, W, k, ph, pw, SH, Bb):
    # ker_ref : SMEM (C*k*k,)        flat scalar taps (1-D avoids SMEM 2-D padding)
    # x_ref   : VMEM (Bb, 1, H, W)   un-padded input planes (one channel)
    # o_ref   : VMEM (Bb, 1, H, W)
    # pad_ref : VMEM (Bb, Hp, Wp)    zero-padded work planes (scratch)
    c = pl.program_id(1)
    kk = k * k
    Hp = H + k - 1
    Wp = W + k - 1
    cdt = pad_ref.dtype

    # Fused zero padding: zero ONLY the four halo strips (interior is
    # overwritten just below).  Re-done every step on purpose: with
    # ("parallel","parallel") megacore sharding each core has its own scratch,
    # so a program_id==0 guard would be wrong.
    if ph > 0:
        pad_ref[:, 0:ph, :] = jnp.zeros((Bb, ph, Wp), cdt)
    if k - 1 - ph > 0:
        pad_ref[:, ph + H:Hp, :] = jnp.zeros((Bb, k - 1 - ph, Wp), cdt)
    if pw > 0:
        pad_ref[:, :, 0:pw] = jnp.zeros((Bb, Hp, pw), cdt)
    if k - 1 - pw > 0:
        pad_ref[:, :, pw + W:Wp] = jnp.zeros((Bb, Hp, k - 1 - pw), cdt)
    pad_ref[:, ph:ph + H, pw:pw + W] = x_ref[:, 0, :, :].astype(cdt)

    def load(bb, r0, nrows, dw):
        return pad_ref[bb, pl.ds(r0, nrows), dw:dw + W]

    def store(bb, r0, sh, acc):
        o_ref[bb, 0, pl.ds(r0, sh), :] = acc.astype(o_ref.dtype)

    def tap(dh, dw):
        # TODO(synk): for alpha==0.5 / sparse SEs, scalar-prefetch a compacted
        # list of finite taps and loop only over those.
        return ker_ref[c * kk + dh * k + dw]      # scalar from SMEM

    _minplus_strips(load, store, tap, H=H, k=k, SH=SH, Bb=Bb)


# ----------------------------------------------------------------------------
# Wrappers: choose layout + tiling, call pallas
# ----------------------------------------------------------------------------
def _inf_conv_packed(x, kernel, k, cdtype):
    B, C, H, W = x.shape
    ph = pw = (k - 1) // 2
    Hp = H + k - 1
    seg = W + k - 1
    Cb = _pick_cb(C, seg)
    G = C // Cb
    L0 = Cb * seg
    L_out = _round_up(L0, 128)                              # lane-dense, unmasked stores
    L_in = _round_up(L_out + k - 1, 128) if k > 1 else L_out

    # Pack: [B,C,H,W] -> zero-pad -> [B,G,Hp,Cb*seg] -> lane-pad to L_in.
    xp = jnp.pad(x.astype(cdtype),
                 ((0, 0), (0, 0), (ph, k - 1 - ph), (pw, k - 1 - pw)))
    xp = xp.reshape(B, G, Cb, Hp, seg).transpose(0, 1, 3, 2, 4).reshape(B, G, Hp, L0)
    xp = jnp.pad(xp, ((0, 0), (0, 0), (0, 0), (0, L_in - L0)))

    # Per-lane tap rows: taps[g, dh*k+dw, cb*seg + j] = kernel[g*Cb+cb, dh, dw].
    taps = kernel.astype(cdtype).reshape(G, Cb, k * k).transpose(0, 2, 1)
    taps = jnp.broadcast_to(taps[..., None], (G, k * k, Cb, seg)).reshape(G, k * k, L0)
    taps = jnp.pad(taps, ((0, 0), (0, 0), (0, L_out - L0)))

    budget, vlimit = _vmem_caps()
    itemsize = jnp.dtype(cdtype).itemsize
    per_b = itemsize * (2 * Hp * L_in + 2 * H * L_out)       # double-buffered in/out
    Bb = _pick_bb(B, per_b, int(budget * 0.8))
    SH = _pick_sh(H, L_out)

    kern = functools.partial(_erosion_kernel_packed, k=k, H=H, SH=SH,
                             L_out=L_out, Bb=Bb)
    outp = pl.pallas_call(
        kern,
        out_shape=jax.ShapeDtypeStruct((B, G, H, L_out), cdtype),
        grid_spec=pltpu.PrefetchScalarGridSpec(
            num_scalar_prefetch=0,
            grid=(G, B // Bb),                               # b innermost: taps stay put
            in_specs=[
                pl.BlockSpec((1, k * k, L_out), lambda g, b: (g, 0, 0)),
                pl.BlockSpec((Bb, 1, Hp, L_in), lambda g, b: (b, g, 0, 0)),
            ],
            out_specs=pl.BlockSpec((Bb, 1, H, L_out), lambda g, b: (b, g, 0, 0)),
        ),
        compiler_params=pltpu.CompilerParams(
            dimension_semantics=("parallel", "parallel"),
            vmem_limit_bytes=vlimit,
        ),
    )(taps, xp)

    # Unpack the lane-dense slab back to NCHW.
    out = outp[..., :L0].reshape(B, G, H, Cb, seg)[..., :W]
    out = out.transpose(0, 1, 3, 2, 4).reshape(B, C, H, W)
    return out.astype(x.dtype)


def _inf_conv_direct(x, kernel, k, cdtype):
    B, C, H, W = x.shape
    ph = pw = (k - 1) // 2
    Hp = H + k - 1
    Wp = W + k - 1

    budget, vlimit = _vmem_caps()
    isz = jnp.dtype(x.dtype).itemsize
    csz = jnp.dtype(cdtype).itemsize
    per_b = 2 * H * W * isz * 2 + Hp * Wp * csz              # dbl-buffered in/out + scratch
    Bb = _pick_bb(B, per_b, int(budget * 0.8))
    SH = _pick_sh(H, W)
    # TODO(synk): for very large planes add grid-level halo tiling over H (and
    # lane tiling over W) so v7x's 64 MiB VMEM keeps double-buffering alive.

    ker_flat = kernel.reshape(C * k * k).astype(jnp.float32)  # 1-D SMEM: tiny padding
    kern = functools.partial(_erosion_kernel_direct, H=H, W=W, k=k, ph=ph, pw=pw,
                             SH=SH, Bb=Bb)
    return pl.pallas_call(
        kern,
        out_shape=jax.ShapeDtypeStruct((B, C, H, W), x.dtype),
        grid_spec=pltpu.PrefetchScalarGridSpec(
            num_scalar_prefetch=1,                           # flat taps -> SMEM once
            grid=(B // Bb, C),
            in_specs=[pl.BlockSpec((Bb, 1, H, W), lambda b, c, ker: (b, c, 0, 0))],
            out_specs=pl.BlockSpec((Bb, 1, H, W), lambda b, c, ker: (b, c, 0, 0)),
            scratch_shapes=[pltpu.VMEM((Bb, Hp, Wp), cdtype)],
        ),
        compiler_params=pltpu.CompilerParams(
            dimension_semantics=("parallel", "parallel"),
            vmem_limit_bytes=vlimit,
        ),
    )(ker_flat, x)


def inf_convolution_2d(x: jnp.ndarray, kernel: jnp.ndarray, *, force_path=None):
    """x: [B,C,H,W], kernel: [C,kH,kW] -> [B,C,H,W] (min-plus 'convolution')."""
    B, C, H, W = x.shape
    kC, kH, kW = kernel.shape
    assert C == kC
    # The reference's F.pad quirk pads W with kH-derived and H with kW-derived
    # amounts; only self-consistent for square kernels (ErosionR2 is square).
    assert kH == kW, "reference semantics only well-defined for square kernels"
    k = kH
    # bf16 inputs keep a bf16 compute path (native on v6e/v7x); otherwise f32.
    cdtype = jnp.bfloat16 if x.dtype == jnp.bfloat16 else jnp.float32
    path = force_path if force_path is not None else ("packed" if W < 128 else "direct")
    if path == "packed":
        return _inf_conv_packed(x, kernel, k, cdtype)
    return _inf_conv_direct(x, kernel, k, cdtype)


# ----------------------------------------------------------------------------
# Pure-JAX reference (for correctness checking only)
# ----------------------------------------------------------------------------
def _inf_convolution_2d_ref(x, kernel):
    B, C, H, W = x.shape
    _, kH, kW = kernel.shape
    pwb = (kH - 1) // 2
    pwa = (kH - 1) - pwb
    phb = (kW - 1) // 2
    pha = (kW - 1) - phb
    xp = jnp.pad(x, ((0, 0), (0, 0), (phb, pha), (pwb, pwa)))
    out = jnp.full_like(x, jnp.inf)
    for dh in range(kH):
        for dw in range(kW):
            out = jnp.minimum(
                out, xp[:, :, dh:dh + H, dw:dw + W] + kernel[None, :, dh, dw, None, None]
            )
    return out


# ----------------------------------------------------------------------------
# ErosionR2 module equivalent
# ----------------------------------------------------------------------------
class ErosionR2:
    def __init__(self, channels: int, kernel_size: int, alpha: float = 0.65, key=None):
        self.channels = channels
        self.kernel_size = kernel_size
        self.alpha = alpha
        # kaiming_uniform-style init for ero_metric [C,2,2]
        # (fan_in = 4, a = sqrt(2) -> bound = sqrt(2/3)*sqrt(3/4) = sqrt(1/2))
        if key is None:
            key = jax.random.PRNGKey(0)
        bound = math.sqrt(0.5)
        self.ero_metric = jax.random.uniform(
            key, (channels, 2, 2), dtype=jnp.float32, minval=-bound, maxval=bound
        )
        self.y = -get_y(kernel_size)  # [k,k,2]

    def get_kernel(self, metric, t: float = 1.0):
        return get_value(get_norm(self.y, metric), self.alpha, t)

    def forward(self, x: jnp.ndarray, t: float = 1.0) -> jnp.ndarray:
        kernel = self.get_kernel(self.ero_metric, t)   # [C,k,k]
        return inf_convolution_2d(x, kernel)

    __call__ = forward


if __name__ == "__main__":
    key = jax.random.PRNGKey(0)
    k_param, k_x = jax.random.split(key)

    # --- Primary example (packed / lane-dense path) -------------------------
    B, C, H, W = 2, 4, 16, 16
    kernel_size = 5
    mod = ErosionR2(channels=C, kernel_size=kernel_size, alpha=0.65, key=k_param)
    x = jax.random.normal(k_x, (B, C, H, W), dtype=jnp.float32)

    out = jax.block_until_ready(mod(x, t=1.0))
    assert out.shape == (B, C, H, W), out.shape
    assert out.dtype == jnp.float32
    assert bool(jnp.all(jnp.isfinite(out)))

    se5 = mod.get_kernel(mod.ero_metric, 1.0)
    ref = _inf_convolution_2d_ref(x, se5)
    assert bool(jnp.allclose(out, ref, atol=1e-5, rtol=1e-5)), "packed path mismatch"

    # --- Same data through the direct (fused-padding) path ------------------
    out_d = jax.block_until_ready(inf_convolution_2d(x, se5, force_path="direct"))
    assert bool(jnp.allclose(out_d, ref, atol=1e-5, rtol=1e-5)), "direct path mismatch"

    # --- Odd sizes: tail strip, Cb packing, Bb>1, k=3 ------------------------
    B2, C2, H2, W2, k2 = 3, 2, 37, 24, 3
    x2 = jax.random.normal(jax.random.PRNGKey(1), (B2, C2, H2, W2), jnp.float32)
    se2 = jnp.abs(jax.random.normal(jax.random.PRNGKey(2), (C2, k2, k2), jnp.float32))
    o2 = jax.block_until_ready(inf_convolution_2d(x2, se2))
    assert bool(jnp.allclose(o2, _inf_convolution_2d_ref(x2, se2), atol=1e-5, rtol=1e-5))

    # --- fori-loop strip path (tall planes), both layouts --------------------
    B3, C3, H3, W3, k3 = 2, 2, 150, 144, 3
    x3 = jax.random.normal(jax.random.PRNGKey(3), (B3, C3, H3, W3), jnp.float32)
    se3 = jnp.abs(jax.random.normal(jax.random.PRNGKey(4), (C3, k3, k3), jnp.float32))
    ref3 = _inf_convolution_2d_ref(x3, se3)
    o3 = jax.block_until_ready(inf_convolution_2d(x3, se3))                       # direct
    assert bool(jnp.allclose(o3, ref3, atol=1e-5, rtol=1e-5))
    o3p = jax.block_until_ready(inf_convolution_2d(x3, se3, force_path="packed"))  # packed
    assert bool(jnp.allclose(o3p, ref3, atol=1e-5, rtol=1e-5))

    print("KERNEL_OK")
</pallas_src>

<mosaic_0001>
module attributes {stable_mosaic.version = 11 : i64} {
  func.func @_erosion_kernel_packed(%arg0: i32, %arg1: i32, %arg2: memref<1x25x128xf32, #tpu.memory_space<vmem>>, %arg3: memref<2x1x20x256xf32, #tpu.memory_space<vmem>>, %arg4: memref<2x1x16x128xf32, #tpu.memory_space<vmem>>) attributes {dimension_semantics = [#tpu.dimension_semantics<parallel>, #tpu.dimension_semantics<parallel>], iteration_bounds = array<i64: 1, 1>, scalar_prefetch = 0 : i64, scratch_operands = 0 : i64, tpu.core_type = #tpu.core_type<tc>, window_params = [{transform_indices = @transform_0, window_bounds = array<i64: 1, 25, 128>}, {transform_indices = @transform_1, window_bounds = array<i64: 2, 1, 20, 256>}, {transform_indices = @transform_2, window_bounds = array<i64: 2, 1, 16, 128>}]} {
    %c0 = arith.constant 0 : index
    %c0_0 = arith.constant 0 : index
    %c0_1 = arith.constant 0 : index
    %c0_2 = arith.constant 0 : index
    %0 = vector.load %arg3[%c0, %c0_0, %c0_1, %c0_2] : memref<2x1x20x256xf32, #tpu.memory_space<vmem>>, vector<1x1x20x128xf32>
    %1 = vector.shape_cast %0 : vector<1x1x20x128xf32> to vector<20x128xf32>
    %2 = vector.extract_strided_slice %1 {offsets = [0, 0], sizes = [16, 128], strides = [1, 1]} : vector<20x128xf32> to vector<16x128xf32>
    %c0_3 = arith.constant 0 : index
    %c0_4 = arith.constant 0 : index
    %c0_5 = arith.constant 0 : index
    %3 = vector.load %arg2[%c0_3, %c0_4, %c0_5] : memref<1x25x128xf32, #tpu.memory_space<vmem>>, vector<1x1x128xf32>
    %4 = vector.shape_cast %3 : vector<1x1x128xf32> to vector<1x128xf32>
    %5 = vector.broadcast %4 : vector<1x128xf32> to vector<16x128xf32>
    %6 = arith.addf %2, %5 : vector<16x128xf32>
    %7 = vector.extract_strided_slice %1 {offsets = [1, 0], sizes = [16, 128], strides = [1, 1]} : vector<20x128xf32> to vector<16x128xf32>
    %c0_6 = arith.constant 0 : index
    %c5 = arith.constant 5 : index
    %c0_7 = arith.constant 0 : index
    %8 = vector.load %arg2[%c0_6, %c5, %c0_7] : memref<1x25x128xf32, #tpu.memory_space<vmem>>, vector<1x1x128xf32>
    %9 = vector.shape_cast %8 : vector<1x1x128xf32> to vector<1x128xf32>
    %10 = vector.broadcast %9 : vector<1x128xf32> to vector<16x128xf32>
    %11 = arith.addf %7, %10 : vector<16x128xf32>
    %12 = arith.minimumf %6, %11 : vector<16x128xf32>
    %13 = vector.extract_strided_slice %1 {offsets = [2, 0], sizes = [16, 128], strides = [1, 1]} : vector<20x128xf32> to vector<16x128xf32>
    %c0_8 = arith.constant 0 : index
    %c10 = arith.constant 10 : index
    %c0_9 = arith.constant 0 : index
    %14 = vector.load %arg2[%c0_8, %c10, %c0_9] : memref<1x25x128xf32, #tpu.memory_space<vmem>>, vector<1x1x128xf32>
    %15 = vector.shape_cast %14 : vector<1x1x128xf32> to vector<1x128xf32>
    %16 = vector.broadcast %15 : vector<1x128xf32> to vector<16x128xf32>
    %17 = arith.addf %13, %16 : vector<16x128xf32>
    %18 = arith.minimumf %12, %17 : vector<16x128xf32>
    %19 = vector.extract_strided_slice %1 {offsets = [3, 0], sizes = [16, 128], strides = [1, 1]} : vector<20x128xf32> to vector<16x128xf32>
    %c0_10 = arith.constant 0 : index
    %c15 = arith.constant 15 : index
    %c0_11 = arith.constant 0 : index
    %20 = vector.load %arg2[%c0_10, %c15, %c0_11] : memref<1x25x128xf32, #tpu.memory_space<vmem>>, vector<1x1x128xf32>
    %21 = vector.shape_cast %20 : vector<1x1x128xf32> to vector<1x128xf32>
    %22 = vector.broadcast %21 : vector<1x128xf32> to vector<16x128xf32>
    %23 = arith.addf %19, %22 : vector<16x128xf32>
    %24 = arith.minimumf %18, %23 : vector<16x128xf32>
    %25 = vector.extract_strided_slice %1 {offsets = [4, 0], sizes = [16, 128], strides = [1, 1]} : vector<20x128xf32> to vector<16x128xf32>
    %c0_12 = arith.constant 0 : index
    %c20 = arith.constant 20 : index
    %c0_13 = arith.constant 0 : index
    %26 = vector.load %arg2[%c0_12, %c20, %c0_13] : memref<1x25x128xf32, #tpu.memory_space<vmem>>, vector<1x1x128xf32>
    %27 = vector.shape_cast %26 : vector<1x1x128xf32> to vector<1x128xf32>
    %28 = vector.broadcast %27 : vector<1x128xf32> to vector<16x128xf32>
    %29 = arith.addf %25, %28 : vector<16x128xf32>
    %30 = arith.minimumf %24, %29 : vector<16x128xf32>
    %c0_14 = arith.constant 0 : index
    %c0_15 = arith.constant 0 : index
    %c0_16 = arith.constant 0 : index
    %c1 = arith.constant 1 : index
    %31 = vector.load %arg3[%c0_14, %c0_15, %c0_16, %c1] : memref<2x1x20x256xf32, #tpu.memory_space<vmem>>, vector<1x1x20x128xf32>
    %32 = vector.shape_cast %31 : vector<1x1x20x128xf32> to vector<20x128xf32>
    %33 = vector.extract_strided_slice %32 {offsets = [0, 0], sizes = [16, 128], strides = [1, 1]} : vector<20x128xf32> to vector<16x128xf32>
    %c0_17 = arith.constant 0 : index
    %c1_18 = arith.constant 1 : index
    %c0_19 = arith.constant 0 : index
    %34 = vector.load %arg2[%c0_17, %c1_18, %c0_19] : memref<1x25x128xf32, #tpu.memory_space<vmem>>, vector<1x1x128xf32>
    %35 = vector.shape_cast %34 : vector<1x1x128xf32> to vector<1x128xf32>
    %36 = vector.broadcast %35 : vector<1x128xf32> to vector<16x128xf32>
    %37 = arith.addf %33, %36 : vector<16x128xf32>
    %38 = arith.minimumf %30, %37 : vector<16x128xf32>
    %39 = vector.extract_strided_slice %32 {offsets = [1, 0], sizes = [16, 128], strides = [1, 1]} : vector<20x128xf32> to vector<16x128xf32>
    %c0_20 = arith.constant 0 : index
    %c6 = arith.constant 6 : index
    %c0_21 = arith.constant 0 : index
    %40 = vector.load %arg2[%c0_20, %c6, %c0_21] : memref<1x25x128xf32, #tpu.memory_space<vmem>>, vector<1x1x128xf32>
    %41 = vector.shape_cast %40 : vector<1x1x128xf32> to vector<1x128xf32>
    %42 = vector.broadcast %41 : vector<1x128xf32> to vector<16x128xf32>
    %43 = arith.addf %39, %42 : vector<16x128xf32>
    %44 = arith.minimumf %38, %43 : vector<16x128xf32>
    %45 = vector.extract_strided_slice %32 {offsets = [2, 0], sizes = [16, 128], strides = [1, 1]} : vector<20x128xf32> to vector<16x128xf32>
    %c0_22 = arith.constant 0 : index
    %c11 = arith.constant 11 : index
    %c0_23 = arith.constant 0 : index
    %46 = vector.load %arg2[%c0_22, %c11, %c0_23] : memref<1x25x128xf32, #tpu.memory_space<vmem>>, vector<1x1x128xf32>
    %47 = vector.shape_cast %46 : vector<1x1x128xf32> to vector<1x128xf32>
    %48 = vector.broadcast %47 : vector<1x128xf32> to vector<16x128xf32>
    %49 = arith.addf %45, %48 : vector<16x128xf32>
    %50 = arith.minimumf %44, %49 : vector<16x128xf32>
    %51 = vector.extract_strided_slice %32 {offsets = [3, 0], sizes = [16, 128], strides = [1, 1]} : vector<20x128xf32> to vector<16x128xf32>
    %c0_24 = arith.constant 0 : index
    %c16 = arith.constant 16 : index
    %c0_25 = arith.constant 0 : index
    %52 = vector.load %arg2[%c0_24, %c16, %c0_25] : memref<1x25x128xf32, #tpu.memory_space<vmem>>, vector<1x1x128xf32>
    %53 = vector.shape_cast %52 : vector<1x1x128xf32> to vector<1x128xf32>
    %54 = vector.broadcast %53 : vector<1x128xf32> to vector<16x128xf32>
    %55 = arith.addf %51, %54 : vector<16x128xf32>
    %56 = arith.minimumf %50, %55 : vector<16x128xf32>
    %57 = vector.extract_strided_slice %32 {offsets = [4, 0], sizes = [16, 128], strides = [1, 1]} : vector<20x128xf32> to vector<16x128xf32>
    %c0_26 = arith.constant 0 : index
    %c21 = arith.constant 21 : index
    %c0_27 = arith.constant 0 : index
    %58 = vector.load %arg2[%c0_26, %c21, %c0_27] : memref<1x25x128xf32, #tpu.memory_space<vmem>>, vector<1x1x128xf32>
    %59 = vector.shape_cast %58 : vector<1x1x128xf32> to vector<1x128xf32>
    %60 = vector.broadcast %59 : vector<1x128xf32> to vector<16x128xf32>
    %61 = arith.addf %57, %60 : vector<16x128xf32>
    %62 = arith.minimumf %56, %61 : vector<16x128xf32>
    %c0_28 = arith.constant 0 : index
    %c0_29 = arith.constant 0 : index
    %c0_30 = arith.constant 0 : index
    %c2 = arith.constant 2 : index
    %63 = vector.load %arg3[%c0_28, %c0_29, %c0_30, %c2] : memref<2x1x20x256xf32, #tpu.memory_space<vmem>>, vector<1x1x20x128xf32>
    %64 = vector.shape_cast %63 : vector<1x1x20x128xf32> to vector<20x128xf32>
    %65 = vector.extract_strided_slice %64 {offsets = [0, 0], sizes = [16, 128], strides = [1, 1]} : vector<20x128xf32> to vector<16x128xf32>
    %c0_31 = arith.constant 0 : index
    %c2_32 = arith.constant 2 : index
    %c0_33 = arith.constant 0 : index
    %66 = vector.load %arg2[%c0_31, %c2_32, %c0_33] : memref<1x25x128xf32, #tpu.memory_space<vmem>>, vector<1x1x128xf32>
    %67 = vector.shape_cast %66 : vector<1x1x128xf32> to vector<1x128xf32>
    %68 = vector.broadcast %67 : vector<1x128xf32> to vector<16x128xf32>
    %69 = arith.addf %65, %68 : vector<16x128xf32>
    %70 = arith.minimumf %62, %69 : vector<16x128xf32>
    %71 = vector.extract_strided_slice %64 {offsets = [1, 0], sizes = [16, 128], strides = [1, 1]} : vector<20x128xf32> to vector<16x128xf32>
    %c0_34 = arith.constant 0 : index
    %c7 = arith.constant 7 : index
    %c0_35 = arith.constant 0 : index
    %72 = vector.load %arg2[%c0_34, %c7, %c0_35] : memref<1x25x128xf32, #tpu.memory_space<vmem>>, vector<1x1x128xf32>
    %73 = vector.shape_cast %72 : vector<1x1x128xf32> to vector<1x128xf32>
    %74 = vector.broadcast %73 : vector<1x128xf32> to vector<16x128xf32>
    %75 = arith.addf %71, %74 : vector<16x128xf32>
    %76 = arith.minimumf %70, %75 : vector<16x128xf32>
    %77 = vector.extract_strided_slice %64 {offsets = [2, 0], sizes = [16, 128], strides = [1, 1]} : vector<20x128xf32> to vector<16x128xf32>
    %c0_36 = arith.constant 0 : index
    %c12 = arith.constant 12 : index
    %c0_37 = arith.constant 0 : index
    %78 = vector.load %arg2[%c0_36, %c12, %c0_37] : memref<1x25x128xf32, #tpu.memory_space<vmem>>, vector<1x1x128xf32>
    %79 = vector.shape_cast %78 : vector<1x1x128xf32> to vector<1x128xf32>
    %80 = vector.broadcast %79 : vector<1x128xf32> to vector<16x128xf32>
    %81 = arith.addf %77, %80 : vector<16x128xf32>
    %82 = arith.minimumf %76, %81 : vector<16x128xf32>
    %83 = vector.extract_strided_slice %64 {offsets = [3, 0], sizes = [16, 128], strides = [1, 1]} : vector<20x128xf32> to vector<16x128xf32>
    %c0_38 = arith.constant 0 : index
    %c17 = arith.constant 17 : index
    %c0_39 = arith.constant 0 : index
    %84 = vector.load %arg2[%c0_38, %c17, %c0_39] : memref<1x25x128xf32, #tpu.memory_space<vmem>>, vector<1x1x128xf32>
    %85 = vector.shape_cast %84 : vector<1x1x128xf32> to vector<1x128xf32>
    %86 = vector.broadcast %85 : vector<1x128xf32> to vector<16x128xf32>
    %87 = arith.addf %83, %86 : vector<16x128xf32>
    %88 = arith.minimumf %82, %87 : vector<16x128xf32>
    %89 = vector.extract_strided_slice %64 {offsets = [4, 0], sizes = [16, 128], strides = [1, 1]} : vector<20x128xf32> to vector<16x128xf32>
    %c0_40 = arith.constant 0 : index
    %c22 = arith.constant 22 : index
    %c0_41 = arith.constant 0 : index
    %90 = vector.load %arg2[%c0_40, %c22, %c0_41] : memref<1x25x128xf32, #tpu.memory_space<vmem>>, vector<1x1x128xf32>
    %91 = vector.shape_cast %90 : vector<1x1x128xf32> to vector<1x128xf32>
    %92 = vector.broadcast %91 : vector<1x128xf32> to vector<16x128xf32>
    %93 = arith.addf %89, %92 : vector<16x128xf32>
    %94 = arith.minimumf %88, %93 : vector<16x128xf32>
    %c0_42 = arith.constant 0 : index
    %c0_43 = arith.constant 0 : index
    %c0_44 = arith.constant 0 : index
    %c3 = arith.constant 3 : index
    %95 = vector.load %arg3[%c0_42, %c0_43, %c0_44, %c3] : memref<2x1x20x256xf32, #tpu.memory_space<vmem>>, vector<1x1x20x128xf32>
    %96 = vector.shape_cast %95 : vector<1x1x20x128xf32> to vector<20x128xf32>
    %97 = vector.extract_strided_slice %96 {offsets = [0, 0], sizes = [16, 128], strides = [1, 1]} : vector<20x128xf32> to vector<16x128xf32>
    %c0_45 = arith.constant 0 : index
    %c3_46 = arith.constant 3 : index
    %c0_47 = arith.constant 0 : index
    %98 = vector.load %arg2[%c0_45, %c3_46, %c0_47] : memref<1x25x128xf32, #tpu.memory_space<vmem>>, vector<1x1x128xf32>
    %99 = vector.shape_cast %98 : vector<1x1x128xf32> to vector<1x128xf32>
    %100 = vector.broadcast %99 : vector<1x128xf32> to vector<16x128xf32>
    %101 = arith.addf %97, %100 : vector<16x128xf32>
    %102 = arith.minimumf %94, %101 : vector<16x128xf32>
    %103 = vector.extract_strided_slice %96 {offsets = [1, 0], sizes = [16, 128], strides = [1, 1]} : vector<20x128xf32> to vector<16x128xf32>
    %c0_48 = arith.constant 0 : index
    %c8 = arith.constant 8 : index
    %c0_49 = arith.constant 0 : index
    %104 = vector.load %arg2[%c0_48, %c8, %c0_49] : memref<1x25x128xf32, #tpu.memory_space<vmem>>, vector<1x1x128xf32>
    %105 = vector.shape_cast %104 : vector<1x1x128xf32> to vector<1x128xf32>
    %106 = vector.broadcast %105 : vector<1x128xf32> to vector<16x128xf32>
    %107 = arith.addf %103, %106 : vector<16x128xf32>
    %108 = arith.minimumf %102, %107 : vector<16x128xf32>
    %109 = vector.extract_strided_slice %96 {offsets = [2, 0], sizes = [16, 128], strides = [1, 1]} : vector<20x128xf32> to vector<16x128xf32>
    %c0_50 = arith.constant 0 : index
    %c13 = arith.constant 13 : index
    %c0_51 = arith.constant 0 : index
    %110 = vector.load %arg2[%c0_50, %c13, %c0_51] : memref<1x25x128xf32, #tpu.memory_space<vmem>>, vector<1x1x128xf32>
    %111 = vector.shape_cast %110 : vector<1x1x128xf32> to vector<1x128xf32>
    %112 = vector.broadcast %111 : vector<1x128xf32> to vector<16x128xf32>
    %113 = arith.addf %109, %112 : vector<16x128xf32>
    %114 = arith.minimumf %108, %113 : vector<16x128xf32>
    %115 = vector.extract_strided_slice %96 {offsets = [3, 0], sizes = [16, 128], strides = [1, 1]} : vector<20x128xf32> to vector<16x128xf32>
    %c0_52 = arith.constant 0 : index
    %c18 = arith.constant 18 : index
    %c0_53 = arith.constant 0 : index
    %116 = vector.load %arg2[%c0_52, %c18, %c0_53] : memref<1x25x128xf32, #tpu.memory_space<vmem>>, vector<1x1x128xf32>
    %117 = vector.shape_cast %116 : vector<1x1x128xf32> to vector<1x128xf32>
    %118 = vector.broadcast %117 : vector<1x128xf32> to vector<16x128xf32>
    %119 = arith.addf %115, %118 : vector<16x128xf32>
    %120 = arith.minimumf %114, %119 : vector<16x128xf32>
    %121 = vector.extract_strided_slice %96 {offsets = [4, 0], sizes = [16, 128], strides = [1, 1]} : vector<20x128xf32> to vector<16x128xf32>
    %c0_54 = arith.constant 0 : index
    %c23 = arith.constant 23 : index
    %c0_55 = arith.constant 0 : index
    %122 = vector.load %arg2[%c0_54, %c23, %c0_55] : memref<1x25x128xf32, #tpu.memory_space<vmem>>, vector<1x1x128xf32>
    %123 = vector.shape_cast %122 : vector<1x1x128xf32> to vector<1x128xf32>
    %124 = vector.broadcast %123 : vector<1x128xf32> to vector<16x128xf32>
    %125 = arith.addf %121, %124 : vector<16x128xf32>
    %126 = arith.minimumf %120, %125 : vector<16x128xf32>
    %c0_56 = arith.constant 0 : index
    %c0_57 = arith.constant 0 : index
    %c0_58 = arith.constant 0 : index
    %c4 = arith.constant 4 : index
    %127 = vector.load %arg3[%c0_56, %c0_57, %c0_58, %c4] : memref<2x1x20x256xf32, #tpu.memory_space<vmem>>, vector<1x1x20x128xf32>
    %128 = vector.shape_cast %127 : vector<1x1x20x128xf32> to vector<20x128xf32>
    %129 = vector.extract_strided_slice %128 {offsets = [0, 0], sizes = [16, 128], strides = [1, 1]} : vector<20x128xf32> to vector<16x128xf32>
    %c0_59 = arith.constant 0 : index
    %c4_60 = arith.constant 4 : index
    %c0_61 = arith.constant 0 : index
    %130 = vector.load %arg2[%c0_59, %c4_60, %c0_61] : memref<1x25x128xf32, #tpu.memory_space<vmem>>, vector<1x1x128xf32>
    %131 = vector.shape_cast %130 : vector<1x1x128xf32> to vector<1x128xf32>
    %132 = vector.broadcast %131 : vector<1x128xf32> to vector<16x128xf32>
    %133 = arith.addf %129, %132 : vector<16x128xf32>
    %134 = arith.minimumf %126, %133 : vector<16x128xf32>
    %135 = vector.extract_strided_slice %128 {offsets = [1, 0], sizes = [16, 128], strides = [1, 1]} : vector<20x128xf32> to vector<16x128xf32>
    %c0_62 = arith.constant 0 : index
    %c9 = arith.constant 9 : index
    %c0_63 = arith.constant 0 : index
    %136 = vector.load %arg2[%c0_62, %c9, %c0_63] : memref<1x25x128xf32, #tpu.memory_space<vmem>>, vector<1x1x128xf32>
    %137 = vector.shape_cast %136 : vector<1x1x128xf32> to vector<1x128xf32>
    %138 = vector.broadcast %137 : vector<1x128xf32> to vector<16x128xf32>
    %139 = arith.addf %135, %138 : vector<16x128xf32>
    %140 = arith.minimumf %134, %139 : vector<16x128xf32>
    %141 = vector.extract_strided_slice %128 {offsets = [2, 0], sizes = [16, 128], strides = [1, 1]} : vector<20x128xf32> to vector<16x128xf32>
    %c0_64 = arith.constant 0 : index
    %c14 = arith.constant 14 : index
    %c0_65 = arith.constant 0 : index
    %142 = vector.load %arg2[%c0_64, %c14, %c0_65] : memref<1x25x128xf32, #tpu.memory_space<vmem>>, vector<1x1x128xf32>
    %143 = vector.shape_cast %142 : vector<1x1x128xf32> to vector<1x128xf32>
    %144 = vector.broadcast %143 : vector<1x128xf32> to vector<16x128xf32>
    %145 = arith.addf %141, %144 : vector<16x128xf32>
    %146 = arith.minimumf %140, %145 : vector<16x128xf32>
    %147 = vector.extract_strided_slice %128 {offsets = [3, 0], sizes = [16, 128], strides = [1, 1]} : vector<20x128xf32> to vector<16x128xf32>
    %c0_66 = arith.constant 0 : index
    %c19 = arith.constant 19 : index
    %c0_67 = arith.constant 0 : index
    %148 = vector.load %arg2[%c0_66, %c19, %c0_67] : memref<1x25x128xf32, #tpu.memory_space<vmem>>, vector<1x1x128xf32>
    %149 = vector.shape_cast %148 : vector<1x1x128xf32> to vector<1x128xf32>
    %150 = vector.broadcast %149 : vector<1x128xf32> to vector<16x128xf32>
    %151 = arith.addf %147, %150 : vector<16x128xf32>
    %152 = arith.minimumf %146, %151 : vector<16x128xf32>
    %153 = vector.extract_strided_slice %128 {offsets = [4, 0], sizes = [16, 128], strides = [1, 1]} : vector<20x128xf32> to vector<16x128xf32>
    %c0_68 = arith.constant 0 : index
    %c24 = arith.constant 24 : index
    %c0_69 = arith.constant 0 : index
    %154 = vector.load %arg2[%c0_68, %c24, %c0_69] : memref<1x25x128xf32, #tpu.memory_space<vmem>>, vector<1x1x128xf32>
    %155 = vector.shape_cast %154 : vector<1x1x128xf32> to vector<1x128xf32>
    %156 = vector.broadcast %155 : vector<1x128xf32> to vector<16x128xf32>
    %157 = arith.addf %153, %156 : vector<16x128xf32>
    %158 = arith.minimumf %152, %157 : vector<16x128xf32>
    %c0_70 = arith.constant 0 : index
    %c0_71 = arith.constant 0 : index
    %c0_72 = arith.constant 0 : index
    %c0_73 = arith.constant 0 : index
    %159 = vector.load %arg4[%c0_70, %c0_71, %c0_72, %c0_73] : memref<2x1x16x128xf32, #tpu.memory_space<vmem>>, vector<1x1x16x128xf32>
    %160 = vector.shape_cast %159 : vector<1x1x16x128xf32> to vector<16x128xf32>
    %161 = vector.shape_cast %158 : vector<16x128xf32> to vector<1x1x16x128xf32>
    tpu.vector_store %arg4[%c0_70, %c0_71, %c0_72, %c0_73], %161 {strides = array<i32>} : memref<2x1x16x128xf32, #tpu.memory_space<vmem>>, vector<1x1x16x128xf32>,
    %c1_74 = arith.constant 1 : index
    %c0_75 = arith.constant 0 : index
    %c0_76 = arith.constant 0 : index
    %c0_77 = arith.constant 0 : index
    %162 = vector.load %arg3[%c1_74, %c0_75, %c0_76, %c0_77] : memref<2x1x20x256xf32, #tpu.memory_space<vmem>>, vector<1x1x20x128xf32>
    %163 = vector.shape_cast %162 : vector<1x1x20x128xf32> to vector<20x128xf32>
    %164 = vector.extract_strided_slice %163 {offsets = [0, 0], sizes = [16, 128], strides = [1, 1]} : vector<20x128xf32> to vector<16x128xf32>
    %c0_78 = arith.constant 0 : index
    %c0_79 = arith.constant 0 : index
    %c0_80 = arith.constant 0 : index
    %165 = vector.load %arg2[%c0_78, %c0_79, %c0_80] : memref<1x25x128xf32, #tpu.memory_space<vmem>>, vector<1x1x128xf32>
    %166 = vector.shape_cast %165 : vector<1x1x128xf32> to vector<1x128xf32>
    %167 = vector.broadcast %166 : vector<1x128xf32> to vector<16x128xf32>
    %168 = arith.addf %164, %167 : vector<16x128xf32>
    %169 = vector.extract_strided_slice %163 {offsets = [1, 0], sizes = [16, 128], strides = [1, 1]} : vector<20x128xf32> to vector<16x128xf32>
    %c0_81 = arith.constant 0 : index
    %c5_82 = arith.constant 5 : index
    %c0_83 = arith.constant 0 : index
    %170 = vector.load %arg2[%c0_81, %c5_82, %c0_83] : memref<1x25x128xf32, #tpu.memory_space<vmem>>, vector<1x1x128xf32>
    %171 = vector.shape_cast %170 : vector<1x1x128xf32> to vector<1x128xf32>
    %172 = vector.broadcast %171 : vector<1x128xf32> to vector<16x128xf32>
    %173 = arith.addf %169, %172 : vector<16x128xf32>
    %174 = arith.minimumf %168, %173 : vector<16x128xf32>
    %175 = vector.extract_strided_slice %163 {offsets = [2, 0], sizes = [16, 128], strides = [1, 1]} : vector<20x128xf32> to vector<16x128xf32>
    %c0_84 = arith.constant 0 : index
    %c10_85 = arith.constant 10 : index
    %c0_86 = arith.constant 0 : index
    %176 = vector.load %arg2[%c0_84, %c10_85, %c0_86] : memref<1x25x128xf32, #tpu.memory_space<vmem>>, vector<1x1x128xf32>
    %177 = vector.shape_cast %176 : vector<1x1x128xf32> to vector<1x128xf32>
    %178 = vector.broadcast %177 : vector<1x128xf32> to vector<16x128xf32>
    %179 = arith.addf %175, %178 : vector<16x128xf32>
    %180 = arith.minimumf %174, %179 : vector<16x128xf32>
    %181 = vector.extract_strided_slice %163 {offsets = [3, 0], sizes = [16, 128], strides = [1, 1]} : vector<20x128xf32> to vector<16x128xf32>
    %c0_87 = arith.constant 0 : index
    %c15_88 = arith.constant 15 : index
    %c0_89 = arith.constant 0 : index
    %182 = vector.load %arg2[%c0_87, %c15_88, %c0_89] : memref<1x25x128xf32, #tpu.memory_space<vmem>>, vector<1x1x128xf32>
    %183 = vector.shape_cast %182 : vector<1x1x128xf32> to vector<1x128xf32>
    %184 = vector.broadcast %183 : vector<1x128xf32> to vector<16x128xf32>
    %185 = arith.addf %181, %184 : vector<16x128xf32>
    %186 = arith.minimumf %180, %185 : vector<16x128xf32>
    %187 = vector.extract_strided_slice %163 {offsets = [4, 0], sizes = [16, 128], strides = [1, 1]} : vector<20x128xf32> to vector<16x128xf32>
    %c0_90 = arith.constant 0 : index
    %c20_91 = arith.constant 20 : index
    %c0_92 = arith.constant 0 : index
    %188 = vector.load %arg2[%c0_90, %c20_91, %c0_92] : memref<1x25x128xf32, #tpu.memory_space<vmem>>, vector<1x1x128xf32>
    %189 = vector.shape_cast %188 : vector<1x1x128xf32> to vector<1x128xf32>
    %190 = vector.broadcast %189 : vector<1x128xf32> to vector<16x128xf32>
    %191 = arith.addf %187, %190 : vector<16x128xf32>
    %192 = arith.minimumf %186, %191 : vector<16x128xf32>
    %c1_93 = arith.constant 1 : index
    %c0_94 = arith.constant 0 : index
    %c0_95 = arith.constant 0 : index
    %c1_96 = arith.constant 1 : index
    %193 = vector.load %arg3[%c1_93, %c0_94, %c0_95, %c1_96] : memref<2x1x20x256xf32, #tpu.memory_space<vmem>>, vector<1x1x20x128xf32>
    %194 = vector.shape_cast %193 : vector<1x1x20x128xf32> to vector<20x128xf32>
    %195 = vector.extract_strided_slice %194 {offsets = [0, 0], sizes = [16, 128], strides = [1, 1]} : vector<20x128xf32> to vector<16x128xf32>
    %c0_97 = arith.constant 0 : index
    %c1_98 = arith.constant 1 : index
    %c0_99 = arith.constant 0 : index
    %196 = vector.load %arg2[%c0_97, %c1_98, %c0_99] : memref<1x25x128xf32, #tpu.memory_space<vmem>>, vector<1x1x128xf32>
    %197 = vector.shape_cast %196 : vector<1x1x128xf32> to vector<1x128xf32>
    %198 = vector.broadcast %197 : vector<1x128xf32> to vector<16x128xf32>
    %199 = arith.addf %195, %198 : vector<16x128xf32>
    %200 = arith.minimumf %192, %199 : vector<16x128xf32>
    %201 = vector.extract_strided_slice %194 {offsets = [1, 0], sizes = [16, 128], strides = [1, 1]} : vector<20x128xf32> to vector<16x128xf32>
    %c0_100 = arith.constant 0 : index
    %c6_101 = arith.constant 6 : index
    %c0_102 = arith.constant 0 : index
    %202 = vector.load %arg2[%c0_100, %c6_101, %c0_102] : memref<1x25x128xf32, #tpu.memory_space<vmem>>, vector<1x1x128xf32>
    %203 = vector.shape_cast %202 : vector<1x1x128xf32> to vector<1x128xf32>
    %204 = vector.broadcast %203 : vector<1x128xf32> to vector<16x128xf32>
    %205 = arith.addf %201, %204 : vector<16x128xf32>
    %206 = arith.minimumf %200, %205 : vector<16x128xf32>
    %207 = vector.extract_strided_slice %194 {offsets = [2, 0], sizes = [16, 128], strides = [1, 1]} : vector<20x128xf32> to vector<16x128xf32>
    %c0_103 = arith.constant 0 : index
    %c11_104 = arith.constant 11 : index
    %c0_105 = arith.constant 0 : index
    %208 = vector.load %arg2[%c0_103, %c11_104, %c0_105] : memref<1x25x128xf32, #tpu.memory_space<vmem>>, vector<1x1x128xf32>
    %209 = vector.shape_cast %208 : vector<1x1x128xf32> to vector<1x128xf32>
    %210 = vector.broadcast %209 : vector<1x128xf32> to vector<16x128xf32>
    %211 = arith.addf %207, %210 : vector<16x128xf32>
    %212 = arith.minimumf %206, %211 : vector<16x128xf32>
    %213 = vector.extract_strided_slice %194 {offsets = [3, 0], sizes = [16, 128], strides = [1, 1]} : vector<20x128xf32> to vector<16x128xf32>
    %c0_106 = arith.constant 0 : index
    %c16_107 = arith.constant 16 : index
    %c0_108 = arith.constant 0 : index
    %214 = vector.load %arg2[%c0_106, %c16_107, %c0_108] : memref<1x25x128xf32, #tpu.memory_space<vmem>>, vector<1x1x128xf32>
    %215 = vector.shape_cast %214 : vector<1x1x128xf32> to vector<1x128xf32>
    %216 = vector.broadcast %215 : vector<1x128xf32> to vector<16x128xf32>
    %217 = arith.addf %213, %216 : vector<16x128xf32>
    %218 = arith.minimumf %212, %217 : vector<16x128xf32>
    %219 = vector.extract_strided_slice %194 {offsets = [4, 0], sizes = [16, 128], strides = [1, 1]} : vector<20x128xf32> to vector<16x128xf32>
    %c0_109 = arith.constant 0 : index
    %c21_110 = arith.constant 21 : index
    %c0_111 = arith.constant 0 : index
    %220 = vector.load %arg2[%c0_109, %c21_110, %c0_111] : memref<1x25x128xf32, #tpu.memory_space<vmem>>, vector<1x1x128xf32>
    %221 = vector.shape_cast %220 : vector<1x1x128xf32> to vector<1x128xf32>
    %222 = vector.broadcast %221 : vector<1x128xf32> to vector<16x128xf32>
    %223 = arith.addf %219, %222 : vector<16x128xf32>
    %224 = arith.minimumf %218, %223 : vector<16x128xf32>
    %c1_112 = arith.constant 1 : index
    %c0_113 = arith.constant 0 : index
    %c0_114 = arith.constant 0 : index
    %c2_115 = arith.constant 2 : index
    %225 = vector.load %arg3[%c1_112, %c0_113, %c0_114, %c2_115] : memref<2x1x20x256xf32, #tpu.memory_space<vmem>>, vector<1x1x20x128xf32>
    %226 = vector.shape_cast %225 : vector<1x1x20x128xf32> to vector<20x128xf32>
    %227 = vector.extract_strided_slice %226 {offsets = [0, 0], sizes = [16, 128], strides = [1, 1]} : vector<20x128xf32> to vector<16x128xf32>
    %c0_116 = arith.constant 0 : index
    %c2_117 = arith.constant 2 : index
    %c0_118 = arith.constant 0 : index
    %228 = vector.load %arg2[%c0_116, %c2_117, %c0_118] : memref<1x25x128xf32, #tpu.memory_space<vmem>>, vector<1x1x128xf32>
    %229 = vector.shape_cast %228 : vector<1x1x128xf32> to vector<1x128xf32>
    %230 = vector.broadcast %229 : vector<1x128xf32> to vector<16x128xf32>
    %231 = arith.addf %227, %230 : vector<16x128xf32>
    %232 = arith.minimumf %224, %231 : vector<16x128xf32>
    %233 = vector.extract_strided_slice %226 {offsets = [1, 0], sizes = [16, 128], strides = [1, 1]} : vector<20x128xf32> to vector<16x128xf32>
    %c0_119 = arith.constant 0 : index
    %c7_120 = arith.constant 7 : index
    %c0_121 = arith.constant 0 : index
    %234 = vector.load %arg2[%c0_119, %c7_120, %c0_121] : memref<1x25x128xf32, #tpu.memory_space<vmem>>, vector<1x1x128xf32>
    %235 = vector.shape_cast %234 : vector<1x1x128xf32> to vector<1x128xf32>
    %236 = vector.broadcast %235 : vector<1x128xf32> to vector<16x128xf32>
    %237 = arith.addf %233, %236 : vector<16x128xf32>
    %238 = arith.minimumf %232, %237 : vector<16x128xf32>
    %239 = vector.extract_strided_slice %226 {offsets = [2, 0], sizes = [16, 128], strides = [1, 1]} : vector<20x128xf32> to vector<16x128xf32>
    %c0_122 = arith.constant 0 : index
    %c12_123 = arith.constant 12 : index
    %c0_124 = arith.constant 0 : index
    %240 = vector.load %arg2[%c0_122, %c12_123, %c0_124] : memref<1x25x128xf32, #tpu.memory_space<vmem>>, vector<1x1x128xf32>
    %241 = vector.shape_cast %240 : vector<1x1x128xf32> to vector<1x128xf32>
    %242 = vector.broadcast %241 : vector<1x128xf32> to vector<16x128xf32>
    %243 = arith.addf %239, %242 : vector<16x128xf32>
    %244 = arith.minimumf %238, %243 : vector<16x128xf32>
    %245 = vector.extract_strided_slice %226 {offsets = [3, 0], sizes = [16, 128], strides = [1, 1]} : vector<20x128xf32> to vector<16x128xf32>
    %c0_125 = arith.constant 0 : index
    %c17_126 = arith.constant 17 : index
    %c0_127 = arith.constant 0 : index
    %246 = vector.load %arg2[%c0_125, %c17_126, %c0_127] : memref<1x25x128xf32, #tpu.memory_space<vmem>>, vector<1x1x128xf32>
    %247 = vector.shape_cast %246 : vector<1x1x128xf32> to vector<1x128xf32>
    %248 = vector.broadcast %247 : vector<1x128xf32> to vector<16x128xf32>
    %249 = arith.addf %245, %248 : vector<16x128xf32>
    %250 = arith.minimumf %244, %249 : vector<16x128xf32>
    %251 = vector.extract_strided_slice %226 {offsets = [4, 0], sizes = [16, 128], strides = [1, 1]} : vector<20x128xf32> to vector<16x128xf32>
    %c0_128 = arith.constant 0 : index
    %c22_129 = arith.constant 22 : index
    %c0_130 = arith.constant 0 : index
    %252 = vector.load %arg2[%c0_128, %c22_129, %c0_130] : memref<1x25x128xf32, #tpu.memory_space<vmem>>, vector<1x1x128xf32>
    %253 = vector.shape_cast %252 : vector<1x1x128xf32> to vector<1x128xf32>
    %254 = vector.broadcast %253 : vector<1x128xf32> to vector<16x128xf32>
    %255 = arith.addf %251, %254 : vector<16x128xf32>
    %256 = arith.minimumf %250, %255 : vector<16x128xf32>
    %c1_131 = arith.constant 1 : index
    %c0_132 = arith.constant 0 : index
    %c0_133 = arith.constant 0 : index
    %c3_134 = arith.constant 3 : index
    %257 = vector.load %arg3[%c1_131, %c0_132, %c0_133, %c3_134] : memref<2x1x20x256xf32, #tpu.memory_space<vmem>>, vector<1x1x20x128xf32>
    %258 = vector.shape_cast %257 : vector<1x1x20x128xf32> to vector<20x128xf32>
    %259 = vector.extract_strided_slice %258 {offsets = [0, 0], sizes = [16, 128], strides = [1, 1]} : vector<20x128xf32> to vector<16x128xf32>
    %c0_135 = arith.constant 0 : index
    %c3_136 = arith.constant 3 : index
    %c0_137 = arith.constant 0 : index
    %260 = vector.load %arg2[%c0_135, %c3_136, %c0_137] : memref<1x25x128xf32, #tpu.memory_space<vmem>>, vector<1x1x128xf32>
    %261 = vector.shape_cast %260 : vector<1x1x128xf32> to vector<1x128xf32>
    %262 = vector.broadcast %261 : vector<1x128xf32> to vector<16x128xf32>
    %263 = arith.addf %259, %262 : vector<16x128xf32>
    %264 = arith.minimumf %256, %263 : vector<16x128xf32>
    %265 = vector.extract_strided_slice %258 {offsets = [1, 0], sizes = [16, 128], strides = [1, 1]} : vector<20x128xf32> to vector<16x128xf32>
    %c0_138 = arith.constant 0 : index
    %c8_139 = arith.constant 8 : index
    %c0_140 = arith.constant 0 : index
    %266 = vector.load %arg2[%c0_138, %c8_139, %c0_140] : memref<1x25x128xf32, #tpu.memory_space<vmem>>, vector<1x1x128xf32>
    %267 = vector.shape_cast %266 : vector<1x1x128xf32> to vector<1x128xf32>
    %268 = vector.broadcast %267 : vector<1x128xf32> to vector<16x128xf32>
    %269 = arith.addf %265, %268 : vector<16x128xf32>
    %270 = arith.minimumf %264, %269 : vector<16x128xf32>
    %271 = vector.extract_strided_slice %258 {offsets = [2, 0], sizes = [16, 128], strides = [1, 1]} : vector<20x128xf32> to vector<16x128xf32>
    %c0_141 = arith.constant 0 : index
    %c13_142 = arith.constant 13 : index
    %c0_143 = arith.constant 0 : index
    %272 = vector.load %arg2[%c0_141, %c13_142, %c0_143] : memref<1x25x128xf32, #tpu.memory_space<vmem>>, vector<1x1x128xf32>
    %273 = vector.shape_cast %272 : vector<1x1x128xf32> to vector<1x128xf32>
    %274 = vector.broadcast %273 : vector<1x128xf32> to vector<16x128xf32>
    %275 = arith.addf %271, %274 : vector<16x128xf32>
    %276 = arith.minimumf %270, %275 : vector<16x128xf32>
    %277 = vector.extract_strided_slice %258 {offsets = [3, 0], sizes = [16, 128], strides = [1, 1]} : vector<20x128xf32> to vector<16x128xf32>
    %c0_144 = arith.constant 0 : index
    %c18_145 = arith.constant 18 : index
    %c0_146 = arith.constant 0 : index
    %278 = vector.load %arg2[%c0_144, %c18_145, %c0_146] : memref<1x25x128xf32, #tpu.memory_space<vmem>>, vector<1x1x128xf32>
    %279 = vector.shape_cast %278 : vector<1x1x128xf32> to vector<1x128xf32>
    %280 = vector.broadcast %279 : vector<1x128xf32> to vector<16x128xf32>
    %281 = arith.addf %277, %280 : vector<16x128xf32>
    %282 = arith.minimumf %276, %281 : vector<16x128xf32>
    %283 = vector.extract_strided_slice %258 {offsets = [4, 0], sizes = [16, 128], strides = [1, 1]} : vector<20x128xf32> to vector<16x128xf32>
    %c0_147 = arith.constant 0 : index
    %c23_148 = arith.constant 23 : index
    %c0_149 = arith.constant 0 : index
    %284 = vector.load %arg2[%c0_147, %c23_148, %c0_149] : memref<1x25x128xf32, #tpu.memory_space<vmem>>, vector<1x1x128xf32>
    %285 = vector.shape_cast %284 : vector<1x1x128xf32> to vector<1x128xf32>
    %286 = vector.broadcast %285 : vector<1x128xf32> to vector<16x128xf32>
    %287 = arith.addf %283, %286 : vector<16x128xf32>
    %288 = arith.minimumf %282, %287 : vector<16x128xf32>
    %c1_150 = arith.constant 1 : index
    %c0_151 = arith.constant 0 : index
    %c0_152 = arith.constant 0 : index
    %c4_153 = arith.constant 4 : index
    %289 = vector.load %arg3[%c1_150, %c0_151, %c0_152, %c4_153] : memref<2x1x20x256xf32, #tpu.memory_space<vmem>>, vector<1x1x20x128xf32>
    %290 = vector.shape_cast %289 : vector<1x1x20x128xf32> to vector<20x128xf32>
    %291 = vector.extract_strided_slice %290 {offsets = [0, 0], sizes = [16, 128], strides = [1, 1]} : vector<20x128xf32> to vector<16x128xf32>
    %c0_154 = arith.constant 0 : index
    %c4_155 = arith.constant 4 : index
    %c0_156 = arith.constant 0 : index
    %292 = vector.load %arg2[%c0_154, %c4_155, %c0_156] : memref<1x25x128xf32, #tpu.memory_space<vmem>>, vector<1x1x128xf32>
    %293 = vector.shape_cast %292 : vector<1x1x128xf32> to vector<1x128xf32>
    %294 = vector.broadcast %293 : vector<1x128xf32> to vector<16x128xf32>
    %295 = arith.addf %291, %294 : vector<16x128xf32>
    %296 = arith.minimumf %288, %295 : vector<16x128xf32>
    %297 = vector.extract_strided_slice %290 {offsets = [1, 0], sizes = [16, 128], strides = [1, 1]} : vector<20x128xf32> to vector<16x128xf32>
    %c0_157 = arith.constant 0 : index
    %c9_158 = arith.constant 9 : index
    %c0_159 = arith.constant 0 : index
    %298 = vector.load %arg2[%c0_157, %c9_158, %c0_159] : memref<1x25x128xf32, #tpu.memory_space<vmem>>, vector<1x1x128xf32>
    %299 = vector.shape_cast %298 : vector<1x1x128xf32> to vector<1x128xf32>
    %300 = vector.broadcast %299 : vector<1x128xf32> to vector<16x128xf32>
    %301 = arith.addf %297, %300 : vector<16x128xf32>
    %302 = arith.minimumf %296, %301 : vector<16x128xf32>
    %303 = vector.extract_strided_slice %290 {offsets = [2, 0], sizes = [16, 128], strides = [1, 1]} : vector<20x128xf32> to vector<16x128xf32>
    %c0_160 = arith.constant 0 : index
    %c14_161 = arith.constant 14 : index
    %c0_162 = arith.constant 0 : index
    %304 = vector.load %arg2[%c0_160, %c14_161, %c0_162] : memref<1x25x128xf32, #tpu.memory_space<vmem>>, vector<1x1x128xf32>
    %305 = vector.shape_cast %304 : vector<1x1x128xf32> to vector<1x128xf32>
    %306 = vector.broadcast %305 : vector<1x128xf32> to vector<16x128xf32>
    %307 = arith.addf %303, %306 : vector<16x128xf32>
    %308 = arith.minimumf %302, %307 : vector<16x128xf32>
    %309 = vector.extract_strided_slice %290 {offsets = [3, 0], sizes = [16, 128], strides = [1, 1]} : vector<20x128xf32> to vector<16x128xf32>
    %c0_163 = arith.constant 0 : index
    %c19_164 = arith.constant 19 : index
    %c0_165 = arith.constant 0 : index
    %310 = vector.load %arg2[%c0_163, %c19_164, %c0_165] : memref<1x25x128xf32, #tpu.memory_space<vmem>>, vector<1x1x128xf32>
    %311 = vector.shape_cast %310 : vector<1x1x128xf32> to vector<1x128xf32>
    %312 = vector.broadcast %311 : vector<1x128xf32> to vector<16x128xf32>
    %313 = arith.addf %309, %312 : vector<16x128xf32>
    %314 = arith.minimumf %308, %313 : vector<16x128xf32>
    %315 = vector.extract_strided_slice %290 {offsets = [4, 0], sizes = [16, 128], strides = [1, 1]} : vector<20x128xf32> to vector<16x128xf32>
    %c0_166 = arith.constant 0 : index
    %c24_167 = arith.constant 24 : index
    %c0_168 = arith.constant 0 : index
    %316 = vector.load %arg2[%c0_166, %c24_167, %c0_168] : memref<1x25x128xf32, #tpu.memory_space<vmem>>, vector<1x1x128xf32>
    %317 = vector.shape_cast %316 : vector<1x1x128xf32> to vector<1x128xf32>
    %318 = vector.broadcast %317 : vector<1x128xf32> to vector<16x128xf32>
    %319 = arith.addf %315, %318 : vector<16x128xf32>
    %320 = arith.minimumf %314, %319 : vector<16x128xf32>
    %c1_169 = arith.constant 1 : index
    %c0_170 = arith.constant 0 : index
    %c0_171 = arith.constant 0 : index
    %c0_172 = arith.constant 0 : index
    %321 = vector.load %arg4[%c1_169, %c0_170, %c0_171, %c0_172] : memref<2x1x16x128xf32, #tpu.memory_space<vmem>>, vector<1x1x16x128xf32>
    %322 = vector.shape_cast %321 : vector<1x1x16x128xf32> to vector<16x128xf32>
    %323 = vector.shape_cast %320 : vector<16x128xf32> to vector<1x1x16x128xf32>
    tpu.vector_store %arg4[%c1_169, %c0_170, %c0_171, %c0_172], %323 {strides = array<i32>} : memref<2x1x16x128xf32, #tpu.memory_space<vmem>>, vector<1x1x16x128xf32>,
    return
  }
  func.func @transform_0(%arg0: i32, %arg1: i32) -> (i32, i32, i32) {
    %c0_i32 = arith.constant 0 : i32
    %c0_i32_0 = arith.constant 0 : i32
    %c0_i32_1 = arith.constant 0 : i32
    return %arg0, %c0_i32, %c0_i32_0 : i32, i32, i32
  }
  func.func @transform_1(%arg0: i32, %arg1: i32) -> (i32, i32, i32, i32) {
    %c0_i32 = arith.constant 0 : i32
    %c0_i32_0 = arith.constant 0 : i32
    %c0_i32_1 = arith.constant 0 : i32
    return %arg1, %arg0, %c0_i32, %c0_i32_0 : i32, i32, i32, i32
  }
  func.func @transform_2(%arg0: i32, %arg1: i32) -> (i32, i32, i32, i32) {
    %c0_i32 = arith.constant 0 : i32
    %c0_i32_0 = arith.constant 0 : i32
    %c0_i32_1 = arith.constant 0 : i32
    return %arg1, %arg0, %c0_i32, %c0_i32_0 : i32, i32, i32, i32
  }
}

</mosaic_0001>

<llo_original>
// kernel: tpu_custom_call.1
$region0: #{tpu_custom_call.1}
  #allocation0 [shape = 'u32[]', space=smem, size = 0x4, offset = 0x4, fixed_abs, tag = 'smem constant byte address 0x4 - core index']
  #allocation1 [shape = 'u32[144,128]{1,0:T(1,128)}', space=vmem, size = 0x12000, scoped, tag = 'internal scratch']
  %s0 = inlined_call_operand.hbm [shape: f32[1,25,128], index: 0, kind: input, shape index: {}]
  %s1 = inlined_call_operand.hbm [shape: f32[2,1,20,256], index: 1, kind: input, shape index: {}]
  %s2 = inlined_call_operand.hbm [shape: f32[2,1,16,128], index: 2, kind: output, shape index: {}]
  %s3 = sld [smem:[#allocation0]]
  $region26: #{tpu_custom_call.1} parent=0
    _
  %s5 = ssub.s32 1, %s3
  %s6 = scalar_select 0, %s5, %s3
  $region1: #{tpu_custom_call.1} parent=0
    #allocation2 [shape = 'u8[16384]{0}', space=vmem, size = 0x4000, scoped, tag = 'input window, operand 0, single buffered']
    #allocation3 [shape = 's32[1]{0}', space=sflag, size = 0x4, scoped, tag = 'scoped memory for tpu_custom_call.1']
    #allocation4 [shape = 's32[1]{0}', space=sflag, size = 0x4, scoped, tag = 'scoped memory for tpu_custom_call.1']
    #allocation5 [shape = 'u8[49152]{0}', space=vmem, size = 0xc000, scoped, tag = 'input window, operand 1, single buffered']
    #allocation6 [shape = 's32[1]{0}', space=sflag, size = 0x4, scoped, tag = 'scoped memory for tpu_custom_call.1']
    #allocation7 [shape = 'u8[16384]{0}', space=vmem, size = 0x4000, scoped, tag = 'output window, operand 0, single buffered']
    %7 = vsyncpa [#allocation3], 0
    %8 = vsyncpa [#allocation6], 0
    %9 = vsyncpa [#allocation4], 0
    // Predicated region
    $region2: #{tpu_custom_call.1} parent=1 // pred_check
      _
    $region3: #{tpu_custom_call.1} parent=1 // pred_check_branch
      %11 = sbr.rel (0) target = $region5
    $region4: #{tpu_custom_call.1} parent=1 // pred_region
      %s13 = ssub.s32 512, 512
      %14 = vsyncadd [#allocation3], %s13
      %s15 = sshll.u32 [#allocation2], 4
      %s16 = int_to_ptr.vmem [resolvable:$true] %s15
      %21 = dma.hbm_to_vmem [thread:$0]  %s0, 512, %s16, [#allocation3], 128, 128, 8
    $region5: #{tpu_custom_call.1} parent=1 // pred_fallthru
      _
    // Predicated region
    $region6: #{tpu_custom_call.1} parent=1 // pred_check
      _
    $region7: #{tpu_custom_call.1} parent=1 // pred_check_branch
      %23 = sbr.rel (0) target = $region9
    $region8: #{tpu_custom_call.1} parent=1 // pred_region
      %s25 = ssub.s32 1536, 1536
      %26 = vsyncadd [#allocation6], %s25
      %s27 = sshll.u32 [#allocation5], 4
      %s28 = int_to_ptr.vmem [resolvable:$true] %s27
      %33 = dma.hbm_to_vmem [thread:$0]  %s1, 1536, %s28, [#allocation6], 256, 256, 16
    $region9: #{tpu_custom_call.1} parent=1 // pred_fallthru
      _
    // Predicated region
    $region10: #{tpu_custom_call.1} parent=1 // pred_check
      _
    $region11: #{tpu_custom_call.1} parent=1 // pred_check_branch
      %35 = sbr.rel (0) target = $region13
    $region12: #{tpu_custom_call.1} parent=1 // pred_region
      %36 = dma.done [#allocation3], 512
    $region13: #{tpu_custom_call.1} parent=1 // pred_fallthru
      _
    // Predicated region
    $region14: #{tpu_custom_call.1} parent=1 // pred_check
      _
    $region15: #{tpu_custom_call.1} parent=1 // pred_check_branch
      %38 = sbr.rel (0) target = $region17
    $region16: #{tpu_custom_call.1} parent=1 // pred_region
      %39 = dma.done [#allocation6], 1536
    $region17: #{tpu_custom_call.1} parent=1 // pred_fallthru
      _
    %v40 = vld [vmem:[#allocation5] sm:$0xff]
    %v41 = vld [vmem:[#allocation5 + $0x10] sm:$0xff]
    %v42 = vld [vmem:[#allocation5 + $0x20] sm:$0xf]
    %v43 = vld [vmem:[#allocation2] sm:$0x1]
    %v44 = vlaneseq
    %v45 = vshrl.u32 %v44, 7
    %v46 = vsub.s32 0, %v45
    %v47 = vrot.slane %v43, %v46
    %v48 = vadd.f32 %v40, %v47
    %v49 = vadd.f32 %v41, %v47
    %v50 = vld [vmem:[#allocation2 + $0x5] sm:$0x1]
    %v51 = vlaneseq
    %v52 = vshrl.u32 %v51, 7
    %v53 = vsub.s32 0, %v52
    %v54 = vrot.slane %v50, %v53
    %v55 = vadd.f32 %v40, %v54
    %v56 = vadd.f32 %v41, %v54
    %v57 = vadd.f32 %v42, %v54
    %vm61 = vcmask 1046528
    %v62 = vrot.slane %v55, 1
    %v63 = vrot.slane %v56, 1
    %v64 = vsel %vm61, %v62, %v63
    %v65 = vrot.slane %v57, 1
    %v66 = vsel %vm61, %v63, %v65
    %v69 = vmin.f32 %v48, %v64
    %v70 = vmin.f32 %v49, %v66
    %v71 = vld [vmem:[#allocation2 + $0xa] sm:$0x1]
    %v72 = vlaneseq
    %v73 = vshrl.u32 %v72, 7
    %v74 = vsub.s32 0, %v73
    %v75 = vrot.slane %v71, %v74
    %v76 = vadd.f32 %v40, %v75
    %v77 = vadd.f32 %v41, %v75
    %v78 = vadd.f32 %v42, %v75
    %vm82 = vcmask 1045504
    %v83 = vrot.slane %v76, 2
    %v84 = vrot.slane %v77, 2
    %v85 = vsel %vm82, %v83, %v84
    %v86 = vrot.slane %v78, 2
    %v87 = vsel %vm82, %v84, %v86
    %v90 = vmin.f32 %v69, %v85
    %v91 = vmin.f32 %v70, %v87
    %v92 = vld [vmem:[#allocation2 + $0xf] sm:$0x1]
    %v93 = vlaneseq
    %v94 = vshrl.u32 %v93, 7
    %v95 = vsub.s32 0, %v94
    %v96 = vrot.slane %v92, %v95
    %v97 = vadd.f32 %v40, %v96
    %v98 = vadd.f32 %v41, %v96
    %v99 = vadd.f32 %v42, %v96
    %vm103 = vcmask 1044480
    %v104 = vrot.slane %v97, 3
    %v105 = vrot.slane %v98, 3
    %v106 = vsel %vm103, %v104, %v105
    %v107 = vrot.slane %v99, 3
    %v108 = vsel %vm103, %v105, %v107
    %v111 = vmin.f32 %v90, %v106
    %v112 = vmin.f32 %v91, %v108
    %v113 = vld [vmem:[#allocation2 + $0x14] sm:$0x1]
    %v114 = vlaneseq
    %v115 = vshrl.u32 %v114, 7
    %v116 = vsub.s32 0, %v115
    %v117 = vrot.slane %v113, %v116
    %v118 = vadd.f32 %v40, %v117
    %v119 = vadd.f32 %v41, %v117
    %v120 = vadd.f32 %v42, %v117
    %vm124 = vcmask 1043456
    %v125 = vrot.slane %v118, 4
    %v126 = vrot.slane %v119, 4
    %v127 = vsel %vm124, %v125, %v126
    %v128 = vrot.slane %v120, 4
    %v129 = vsel %vm124, %v126, %v128
    %v132 = vmin.f32 %v111, %v127
    %v133 = vmin.f32 %v112, %v129
    %v134 = vld [vmem:[#allocation5 + $0x8] sm:$0xff]
    %v135 = vld [vmem:[#allocation5 + $0x18] sm:$0xff]
    %v136 = vld [vmem:[#allocation5 + $0x28] sm:$0xf]
    %v137 = vld [vmem:[#allocation2 + $0x1] sm:$0x1]
    %v138 = vlaneseq
    %v139 = vshrl.u32 %v138, 7
    %v140 = vsub.s32 0, %v139
    %v141 = vrot.slane %v137, %v140
    %143 = vrot.lane.b32.xlu0 %v141, 1
    %v144 = vpop.permute.xlu0 %143
    %v146 = vadd.f32 %v40, %v144
    %v147 = vadd.f32 %v134, %v144
    %v148 = vadd.f32 %v41, %v144
    %v149 = vadd.f32 %v135, %v144
    %154 = vrot.lane.b32.xlu0 %v146, 127
    %v155 = vpop.permute.xlu0 %154
    %156 = vrot.lane.b32.xlu0 %v147, 127
    %v157 = vpop.permute.xlu0 %156
    %158 = vrot.lane.b32.xlu0 %v148, 127
    %v159 = vpop.permute.xlu0 %158
    %160 = vrot.lane.b32.xlu0 %v149, 127
    %v161 = vpop.permute.xlu0 %160
    %vm162 = vcmask 1039360
    %v163 = vsel %vm162, %v155, %v157
    %v164 = vsel %vm162, %v159, %v161
    %v167 = vmin.f32 %v132, %v163
    %v168 = vmin.f32 %v133, %v164
    %v169 = vld [vmem:[#allocation2 + $0x6] sm:$0x1]
    %v170 = vlaneseq
    %v171 = vshrl.u32 %v170, 7
    %v172 = vsub.s32 0, %v171
    %v173 = vrot.slane %v169, %v172
    %175 = vrot.lane.b32.xlu0 %v173, 1
    %v176 = vpop.permute.xlu0 %175
    %v178 = vadd.f32 %v40, %v176
    %v179 = vadd.f32 %v134, %v176
    %v180 = vadd.f32 %v41, %v176
    %v181 = vadd.f32 %v135, %v176
    %v182 = vadd.f32 %v42, %v176
    %v183 = vadd.f32 %v136, %v176
    %v190 = vrot.slane %v178, 1
    %v191 = vrot.slane %v180, 1
    %v192 = vsel %vm61, %v190, %v191
    %v193 = vrot.slane %v179, 1
    %v194 = vrot.slane %v181, 1
    %v195 = vsel %vm61, %v193, %v194
    %v196 = vrot.slane %v182, 1
    %v197 = vsel %vm61, %v191, %v196
    %v198 = vrot.slane %v183, 1
    %v199 = vsel %vm61, %v194, %v198
    %200 = vrot.lane.b32.xlu0 %v192, 127
    %v201 = vpop.permute.xlu0 %200
    %202 = vrot.lane.b32.xlu0 %v195, 127
    %v203 = vpop.permute.xlu0 %202
    %204 = vrot.lane.b32.xlu0 %v197, 127
    %v205 = vpop.permute.xlu0 %204
    %206 = vrot.lane.b32.xlu0 %v199, 127
    %v207 = vpop.permute.xlu0 %206
    %v208 = vsel %vm162, %v201, %v203
    %v209 = vsel %vm162, %v205, %v207
    %v212 = vmin.f32 %v167, %v208
    %v213 = vmin.f32 %v168, %v209
    %v214 = vld [vmem:[#allocation2 + $0xb] sm:$0x1]
    %v215 = vlaneseq
    %v216 = vshrl.u32 %v215, 7
    %v217 = vsub.s32 0, %v216
    %v218 = vrot.slane %v214, %v217
    %220 = vrot.lane.b32.xlu0 %v218, 1
    %v221 = vpop.permute.xlu0 %220
    %v223 = vadd.f32 %v40, %v221
    %v224 = vadd.f32 %v134, %v221
    %v225 = vadd.f32 %v41, %v221
    %v226 = vadd.f32 %v135, %v221
    %v227 = vadd.f32 %v42, %v221
    %v228 = vadd.f32 %v136, %v221
    %v235 = vrot.slane %v223, 2
    %v236 = vrot.slane %v225, 2
    %v237 = vsel %vm82, %v235, %v236
    %v238 = vrot.slane %v224, 2
    %v239 = vrot.slane %v226, 2
    %v240 = vsel %vm82, %v238, %v239
    %v241 = vrot.slane %v227, 2
    %v242 = vsel %vm82, %v236, %v241
    %v243 = vrot.slane %v228, 2
    %v244 = vsel %vm82, %v239, %v243
    %245 = vrot.lane.b32.xlu0 %v237, 127
    %v246 = vpop.permute.xlu0 %245
    %247 = vrot.lane.b32.xlu0 %v240, 127
    %v248 = vpop.permute.xlu0 %247
    %249 = vrot.lane.b32.xlu0 %v242, 127
    %v250 = vpop.permute.xlu0 %249
    %251 = vrot.lane.b32.xlu0 %v244, 127
    %v252 = vpop.permute.xlu0 %251
    %v253 = vsel %vm162, %v246, %v248
    %v254 = vsel %vm162, %v250, %v252
    %v257 = vmin.f32 %v212, %v253
    %v258 = vmin.f32 %v213, %v254
    %v259 = vld [vmem:[#allocation2 + $0x10] sm:$0x1]
    %v260 = vlaneseq
    %v261 = vshrl.u32 %v260, 7
    %v262 = vsub.s32 0, %v261
    %v263 = vrot.slane %v259, %v262
    %265 = vrot.lane.b32.xlu0 %v263, 1
    %v266 = vpop.permute.xlu0 %265
    %v268 = vadd.f32 %v40, %v266
    %v269 = vadd.f32 %v134, %v266
    %v270 = vadd.f32 %v41, %v266
    %v271 = vadd.f32 %v135, %v266
    %v272 = vadd.f32 %v42, %v266
    %v273 = vadd.f32 %v136, %v266
    %v280 = vrot.slane %v268, 3
    %v281 = vrot.slane %v270, 3
    %v282 = vsel %vm103, %v280, %v281
    %v283 = vrot.slane %v269, 3
    %v284 = vrot.slane %v271, 3
    %v285 = vsel %vm103, %v283, %v284
    %v286 = vrot.slane %v272, 3
    %v287 = vsel %vm103, %v281, %v286
    %v288 = vrot.slane %v273, 3
    %v289 = vsel %vm103, %v284, %v288
    %290 = vrot.lane.b32.xlu0 %v282, 127
    %v291 = vpop.permute.xlu0 %290
    %292 = vrot.lane.b32.xlu0 %v285, 127
    %v293 = vpop.permute.xlu0 %292
    %294 = vrot.lane.b32.xlu0 %v287, 127
    %v295 = vpop.permute.xlu0 %294
    %296 = vrot.lane.b32.xlu0 %v289, 127
    %v297 = vpop.permute.xlu0 %296
    %v298 = vsel %vm162, %v291, %v293
    %v299 = vsel %vm162, %v295, %v297
    %v302 = vmin.f32 %v257, %v298
    %v303 = vmin.f32 %v258, %v299
    %v304 = vld [vmem:[#allocation2 + $0x15] sm:$0x1]
    %v305 = vlaneseq
    %v306 = vshrl.u32 %v305, 7
    %v307 = vsub.s32 0, %v306
    %v308 = vrot.slane %v304, %v307
    %310 = vrot.lane.b32.xlu0 %v308, 1
    %v311 = vpop.permute.xlu0 %310
    %v313 = vadd.f32 %v40, %v311
    %v314 = vadd.f32 %v134, %v311
    %v315 = vadd.f32 %v41, %v311
    %v316 = vadd.f32 %v135, %v311
    %v317 = vadd.f32 %v42, %v311
    %v318 = vadd.f32 %v136, %v311
    %v325 = vrot.slane %v313, 4
    %v326 = vrot.slane %v315, 4
    %v327 = vsel %vm124, %v325, %v326
    %v328 = vrot.slane %v314, 4
    %v329 = vrot.slane %v316, 4
    %v330 = vsel %vm124, %v328, %v329
    %v331 = vrot.slane %v317, 4
    %v332 = vsel %vm124, %v326, %v331
    %v333 = vrot.slane %v318, 4
    %v334 = vsel %vm124, %v329, %v333
    %335 = vrot.lane.b32.xlu0 %v327, 127
    %v336 = vpop.permute.xlu0 %335
    %337 = vrot.lane.b32.xlu0 %v330, 127
    %v338 = vpop.permute.xlu0 %337
    %339 = vrot.lane.b32.xlu0 %v332, 127
    %v340 = vpop.permute.xlu0 %339
    %341 = vrot.lane.b32.xlu0 %v334, 127
    %v342 = vpop.permute.xlu0 %341
    %v343 = vsel %vm162, %v336, %v338
    %v344 = vsel %vm162, %v340, %v342
    %v347 = vmin.f32 %v302, %v343
    %v348 = vmin.f32 %v303, %v344
    %v349 = vld [vmem:[#allocation2 + $0x2] sm:$0x1]
    %v350 = vlaneseq
    %v351 = vshrl.u32 %v350, 7
    %v352 = vsub.s32 0, %v351
    %v353 = vrot.slane %v349, %v352
    %355 = vrot.lane.b32.xlu0 %v353, 2
    %v356 = vpop.permute.xlu0 %355
    %v358 = vadd.f32 %v40, %v356
    %v359 = vadd.f32 %v134, %v356
    %v360 = vadd.f32 %v41, %v356
    %v361 = vadd.f32 %v135, %v356
    %366 = vrot.lane.b32.xlu0 %v358, 126
    %v367 = vpop.permute.xlu0 %366
    %368 = vrot.lane.b32.xlu0 %v359, 126
    %v369 = vpop.permute.xlu0 %368
    %370 = vrot.lane.b32.xlu0 %v360, 126
    %v371 = vpop.permute.xlu0 %370
    %372 = vrot.lane.b32.xlu0 %v361, 126
    %v373 = vpop.permute.xlu0 %372
    %vm374 = vcmask 1031168
    %v375 = vsel %vm374, %v367, %v369
    %v376 = vsel %vm374, %v371, %v373
    %v379 = vmin.f32 %v347, %v375
    %v380 = vmin.f32 %v348, %v376
    %v381 = vld [vmem:[#allocation2 + $0x7] sm:$0x1]
    %v382 = vlaneseq
    %v383 = vshrl.u32 %v382, 7
    %v384 = vsub.s32 0, %v383
    %v385 = vrot.slane %v381, %v384
    %387 = vrot.lane.b32.xlu0 %v385, 2
    %v388 = vpop.permute.xlu0 %387
    %v390 = vadd.f32 %v40, %v388
    %v391 = vadd.f32 %v134, %v388
    %v392 = vadd.f32 %v41, %v388
    %v393 = vadd.f32 %v135, %v388
    %v394 = vadd.f32 %v42, %v388
    %v395 = vadd.f32 %v136, %v388
    %v402 = vrot.slane %v390, 1
    %v403 = vrot.slane %v392, 1
    %v404 = vsel %vm61, %v402, %v403
    %v405 = vrot.slane %v391, 1
    %v406 = vrot.slane %v393, 1
    %v407 = vsel %vm61, %v405, %v406
    %v408 = vrot.slane %v394, 1
    %v409 = vsel %vm61, %v403, %v408
    %v410 = vrot.slane %v395, 1
    %v411 = vsel %vm61, %v406, %v410
    %412 = vrot.lane.b32.xlu0 %v404, 126
    %v413 = vpop.permute.xlu0 %412
    %414 = vrot.lane.b32.xlu0 %v407, 126
    %v415 = vpop.permute.xlu0 %414
    %416 = vrot.lane.b32.xlu0 %v409, 126
    %v417 = vpop.permute.xlu0 %416
    %418 = vrot.lane.b32.xlu0 %v411, 126
    %v419 = vpop.permute.xlu0 %418
    %v420 = vsel %vm374, %v413, %v415
    %v421 = vsel %vm374, %v417, %v419
    %v424 = vmin.f32 %v379, %v420
    %v425 = vmin.f32 %v380, %v421
    %v426 = vld [vmem:[#allocation2 + $0xc] sm:$0x1]
    %v427 = vlaneseq
    %v428 = vshrl.u32 %v427, 7
    %v429 = vsub.s32 0, %v428
    %v430 = vrot.slane %v426, %v429
    %432 = vrot.lane.b32.xlu0 %v430, 2
    %v433 = vpop.permute.xlu0 %432
    %v435 = vadd.f32 %v40, %v433
    %v436 = vadd.f32 %v134, %v433
    %v437 = vadd.f32 %v41, %v433
    %v438 = vadd.f32 %v135, %v433
    %v439 = vadd.f32 %v42, %v433
    %v440 = vadd.f32 %v136, %v433
    %v447 = vrot.slane %v435, 2
    %v448 = vrot.slane %v437, 2
    %v449 = vsel %vm82, %v447, %v448
    %v450 = vrot.slane %v436, 2
    %v451 = vrot.slane %v438, 2
    %v452 = vsel %vm82, %v450, %v451
    %v453 = vrot.slane %v439, 2
    %v454 = vsel %vm82, %v448, %v453
    %v455 = vrot.slane %v440, 2
    %v456 = vsel %vm82, %v451, %v455
    %457 = vrot.lane.b32.xlu0 %v449, 126
    %v458 = vpop.permute.xlu0 %457
    %459 = vrot.lane.b32.xlu0 %v452, 126
    %v460 = vpop.permute.xlu0 %459
    %461 = vrot.lane.b32.xlu0 %v454, 126
    %v462 = vpop.permute.xlu0 %461
    %463 = vrot.lane.b32.xlu0 %v456, 126
    %v464 = vpop.permute.xlu0 %463
    %v465 = vsel %vm374, %v458, %v460
    %v466 = vsel %vm374, %v462, %v464
    %v469 = vmin.f32 %v424, %v465
    %v470 = vmin.f32 %v425, %v466
    %v471 = vld [vmem:[#allocation2 + $0x11] sm:$0x1]
    %v472 = vlaneseq
    %v473 = vshrl.u32 %v472, 7
    %v474 = vsub.s32 0, %v473
    %v475 = vrot.slane %v471, %v474
    %477 = vrot.lane.b32.xlu0 %v475, 2
    %v478 = vpop.permute.xlu0 %477
    %v480 = vadd.f32 %v40, %v478
    %v481 = vadd.f32 %v134, %v478
    %v482 = vadd.f32 %v41, %v478
    %v483 = vadd.f32 %v135, %v478
    %v484 = vadd.f32 %v42, %v478
    %v485 = vadd.f32 %v136, %v478
    %v492 = vrot.slane %v480, 3
    %v493 = vrot.slane %v482, 3
    %v494 = vsel %vm103, %v492, %v493
    %v495 = vrot.slane %v481, 3
    %v496 = vrot.slane %v483, 3
    %v497 = vsel %vm103, %v495, %v496
    %v498 = vrot.slane %v484, 3
    %v499 = vsel %vm103, %v493, %v498
    %v500 = vrot.slane %v485, 3
    %v501 = vsel %vm103, %v496, %v500
    %502 = vrot.lane.b32.xlu0 %v494, 126
    %v503 = vpop.permute.xlu0 %502
    %504 = vrot.lane.b32.xlu0 %v497, 126
    %v505 = vpop.permute.xlu0 %504
    %506 = vrot.lane.b32.xlu0 %v499, 126
    %v507 = vpop.permute.xlu0 %506
    %508 = vrot.lane.b32.xlu0 %v501, 126
    %v509 = vpop.permute.xlu0 %508
    %v510 = vsel %vm374, %v503, %v505
    %v511 = vsel %vm374, %v507, %v509
    %v514 = vmin.f32 %v469, %v510
    %v515 = vmin.f32 %v470, %v511
    %v516 = vld [vmem:[#allocation2 + $0x16] sm:$0x1]
    %v517 = vlaneseq
    %v518 = vshrl.u32 %v517, 7
    %v519 = vsub.s32 0, %v518
    %v520 = vrot.slane %v516, %v519
    %522 = vrot.lane.b32.xlu0 %v520, 2
    %v523 = vpop.permute.xlu0 %522
    %v525 = vadd.f32 %v40, %v523
    %v526 = vadd.f32 %v134, %v523
    %v527 = vadd.f32 %v41, %v523
    %v528 = vadd.f32 %v135, %v523
    %v529 = vadd.f32 %v42, %v523
    %v530 = vadd.f32 %v136, %v523
    %v537 = vrot.slane %v525, 4
    %v538 = vrot.slane %v527, 4
    %v539 = vsel %vm124, %v537, %v538
    %v540 = vrot.slane %v526, 4
    %v541 = vrot.slane %v528, 4
    %v542 = vsel %vm124, %v540, %v541
    %v543 = vrot.slane %v529, 4
    %v544 = vsel %vm124, %v538, %v543
    %v545 = vrot.slane %v530, 4
    %v546 = vsel %vm124, %v541, %v545
    %547 = vrot.lane.b32.xlu0 %v539, 126
    %v548 = vpop.permute.xlu0 %547
    %549 = vrot.lane.b32.xlu0 %v542, 126
    %v550 = vpop.permute.xlu0 %549
    %551 = vrot.lane.b32.xlu0 %v544, 126
    %v552 = vpop.permute.xlu0 %551
    %553 = vrot.lane.b32.xlu0 %v546, 126
    %v554 = vpop.permute.xlu0 %553
    %v555 = vsel %vm374, %v548, %v550
    %v556 = vsel %vm374, %v552, %v554
    %v559 = vmin.f32 %v514, %v555
    %v560 = vmin.f32 %v515, %v556
    %v561 = vld [vmem:[#allocation2 + $0x3] sm:$0x1]
    %v562 = vlaneseq
    %v563 = vshrl.u32 %v562, 7
    %v564 = vsub.s32 0, %v563
    %v565 = vrot.slane %v561, %v564
    %567 = vrot.lane.b32.xlu0 %v565, 3
    %v568 = vpop.permute.xlu0 %567
    %v570 = vadd.f32 %v40, %v568
    %v571 = vadd.f32 %v134, %v568
    %v572 = vadd.f32 %v41, %v568
    %v573 = vadd.f32 %v135, %v568
    %578 = vrot.lane.b32.xlu0 %v570, 125
    %v579 = vpop.permute.xlu0 %578
    %580 = vrot.lane.b32.xlu0 %v571, 125
    %v581 = vpop.permute.xlu0 %580
    %582 = vrot.lane.b32.xlu0 %v572, 125
    %v583 = vpop.permute.xlu0 %582
    %584 = vrot.lane.b32.xlu0 %v573, 125
    %v585 = vpop.permute.xlu0 %584
    %vm586 = vcmask 1022976
    %v587 = vsel %vm586, %v579, %v581
    %v588 = vsel %vm586, %v583, %v585
    %v591 = vmin.f32 %v559, %v587
    %v592 = vmin.f32 %v560, %v588
    %v593 = vld [vmem:[#allocation2 + $0x8] sm:$0x1]
    %v594 = vlaneseq
    %v595 = vshrl.u32 %v594, 7
    %v596 = vsub.s32 0, %v595
    %v597 = vrot.slane %v593, %v596
    %599 = vrot.lane.b32.xlu0 %v597, 3
    %v600 = vpop.permute.xlu0 %599
    %v602 = vadd.f32 %v40, %v600
    %v603 = vadd.f32 %v134, %v600
    %v604 = vadd.f32 %v41, %v600
    %v605 = vadd.f32 %v135, %v600
    %v606 = vadd.f32 %v42, %v600
    %v607 = vadd.f32 %v136, %v600
    %v614 = vrot.slane %v602, 1
    %v615 = vrot.slane %v604, 1
    %v616 = vsel %vm61, %v614, %v615
    %v617 = vrot.slane %v603, 1
    %v618 = vrot.slane %v605, 1
    %v619 = vsel %vm61, %v617, %v618
    %v620 = vrot.slane %v606, 1
    %v621 = vsel %vm61, %v615, %v620
    %v622 = vrot.slane %v607, 1
    %v623 = vsel %vm61, %v618, %v622
    %624 = vrot.lane.b32.xlu0 %v616, 125
    %v625 = vpop.permute.xlu0 %624
    %626 = vrot.lane.b32.xlu0 %v619, 125
    %v627 = vpop.permute.xlu0 %626
    %628 = vrot.lane.b32.xlu0 %v621, 125
    %v629 = vpop.permute.xlu0 %628
    %630 = vrot.lane.b32.xlu0 %v623, 125
    %v631 = vpop.permute.xlu0 %630
    %v632 = vsel %vm586, %v625, %v627
    %v633 = vsel %vm586, %v629, %v631
    %v636 = vmin.f32 %v591, %v632
    %v637 = vmin.f32 %v592, %v633
    %v638 = vld [vmem:[#allocation2 + $0xd] sm:$0x1]
    %v639 = vlaneseq
    %v640 = vshrl.u32 %v639, 7
    %v641 = vsub.s32 0, %v640
    %v642 = vrot.slane %v638, %v641
    %644 = vrot.lane.b32.xlu0 %v642, 3
    %v645 = vpop.permute.xlu0 %644
    %v647 = vadd.f32 %v40, %v645
    %v648 = vadd.f32 %v134, %v645
    %v649 = vadd.f32 %v41, %v645
    %v650 = vadd.f32 %v135, %v645
    %v651 = vadd.f32 %v42, %v645
    %v652 = vadd.f32 %v136, %v645
    %v659 = vrot.slane %v647, 2
    %v660 = vrot.slane %v649, 2
    %v661 = vsel %vm82, %v659, %v660
    %v662 = vrot.slane %v648, 2
    %v663 = vrot.slane %v650, 2
    %v664 = vsel %vm82, %v662, %v663
    %v665 = vrot.slane %v651, 2
    %v666 = vsel %vm82, %v660, %v665
    %v667 = vrot.slane %v652, 2
    %v668 = vsel %vm82, %v663, %v667
    %669 = vrot.lane.b32.xlu0 %v661, 125
    %v670 = vpop.permute.xlu0 %669
    %671 = vrot.lane.b32.xlu0 %v664, 125
    %v672 = vpop.permute.xlu0 %671
    %673 = vrot.lane.b32.xlu0 %v666, 125
    %v674 = vpop.permute.xlu0 %673
    %675 = vrot.lane.b32.xlu0 %v668, 125
    %v676 = vpop.permute.xlu0 %675
    %v677 = vsel %vm586, %v670, %v672
    %v678 = vsel %vm586, %v674, %v676
    %v681 = vmin.f32 %v636, %v677
    %v682 = vmin.f32 %v637, %v678
    %v683 = vld [vmem:[#allocation2 + $0x12] sm:$0x1]
    %v684 = vlaneseq
    %v685 = vshrl.u32 %v684, 7
    %v686 = vsub.s32 0, %v685
    %v687 = vrot.slane %v683, %v686
    %689 = vrot.lane.b32.xlu0 %v687, 3
    %v690 = vpop.permute.xlu0 %689
    %v692 = vadd.f32 %v40, %v690
    %v693 = vadd.f32 %v134, %v690
    %v694 = vadd.f32 %v41, %v690
    %v695 = vadd.f32 %v135, %v690
    %v696 = vadd.f32 %v42, %v690
    %v697 = vadd.f32 %v136, %v690
    %v704 = vrot.slane %v692, 3
    %v705 = vrot.slane %v694, 3
    %v706 = vsel %vm103, %v704, %v705
    %v707 = vrot.slane %v693, 3
    %v708 = vrot.slane %v695, 3
    %v709 = vsel %vm103, %v707, %v708
    %v710 = vrot.slane %v696, 3
    %v711 = vsel %vm103, %v705, %v710
    %v712 = vrot.slane %v697, 3
    %v713 = vsel %vm103, %v708, %v712
    %714 = vrot.lane.b32.xlu0 %v706, 125
    %v715 = vpop.permute.xlu0 %714
    %716 = vrot.lane.b32.xlu0 %v709, 125
    %v717 = vpop.permute.xlu0 %716
    %718 = vrot.lane.b32.xlu0 %v711, 125
    %v719 = vpop.permute.xlu0 %718
    %720 = vrot.lane.b32.xlu0 %v713, 125
    %v721 = vpop.permute.xlu0 %720
    %v722 = vsel %vm586, %v715, %v717
    %v723 = vsel %vm586, %v719, %v721
    %v726 = vmin.f32 %v681, %v722
    %v727 = vmin.f32 %v682, %v723
    %v728 = vld [vmem:[#allocation2 + $0x17] sm:$0x1]
    %v729 = vlaneseq
    %v730 = vshrl.u32 %v729, 7
    %v731 = vsub.s32 0, %v730
    %v732 = vrot.slane %v728, %v731
    %734 = vrot.lane.b32.xlu0 %v732, 3
    %v735 = vpop.permute.xlu0 %734
    %v737 = vadd.f32 %v40, %v735
    %v738 = vadd.f32 %v134, %v735
    %v739 = vadd.f32 %v41, %v735
    %v740 = vadd.f32 %v135, %v735
    %v741 = vadd.f32 %v42, %v735
    %v742 = vadd.f32 %v136, %v735
    %v749 = vrot.slane %v737, 4
    %v750 = vrot.slane %v739, 4
    %v751 = vsel %vm124, %v749, %v750
    %v752 = vrot.slane %v738, 4
    %v753 = vrot.slane %v740, 4
    %v754 = vsel %vm124, %v752, %v753
    %v755 = vrot.slane %v741, 4
    %v756 = vsel %vm124, %v750, %v755
    %v757 = vrot.slane %v742, 4
    %v758 = vsel %vm124, %v753, %v757
    %759 = vrot.lane.b32.xlu0 %v751, 125
    %v760 = vpop.permute.xlu0 %759
    %761 = vrot.lane.b32.xlu0 %v754, 125
    %v762 = vpop.permute.xlu0 %761
    %763 = vrot.lane.b32.xlu0 %v756, 125
    %v764 = vpop.permute.xlu0 %763
    %765 = vrot.lane.b32.xlu0 %v758, 125
    %v766 = vpop.permute.xlu0 %765
    %v767 = vsel %vm586, %v760, %v762
    %v768 = vsel %vm586, %v764, %v766
    %v771 = vmin.f32 %v726, %v767
    %v772 = vmin.f32 %v727, %v768
    %v773 = vld [vmem:[#allocation2 + $0x4] sm:$0x1]
    %v774 = vlaneseq
    %v775 = vshrl.u32 %v774, 7
    %v776 = vsub.s32 0, %v775
    %v777 = vrot.slane %v773, %v776
    %779 = vrot.lane.b32.xlu0 %v777, 4
    %v780 = vpop.permute.xlu0 %779
    %v782 = vadd.f32 %v40, %v780
    %v783 = vadd.f32 %v134, %v780
    %v784 = vadd.f32 %v41, %v780
    %v785 = vadd.f32 %v135, %v780
    %790 = vrot.lane.b32.xlu0 %v782, 124
    %v791 = vpop.permute.xlu0 %790
    %792 = vrot.lane.b32.xlu0 %v783, 124
    %v793 = vpop.permute.xlu0 %792
    %794 = vrot.lane.b32.xlu0 %v784, 124
    %v795 = vpop.permute.xlu0 %794
    %796 = vrot.lane.b32.xlu0 %v785, 124
    %v797 = vpop.permute.xlu0 %796
    %vm798 = vcmask 1014784
    %v799 = vsel %vm798, %v791, %v793
    %v800 = vsel %vm798, %v795, %v797
    %v803 = vmin.f32 %v771, %v799
    %v804 = vmin.f32 %v772, %v800
    %v805 = vld [vmem:[#allocation2 + $0x9] sm:$0x1]
    %v806 = vlaneseq
    %v807 = vshrl.u32 %v806, 7
    %v808 = vsub.s32 0, %v807
    %v809 = vrot.slane %v805, %v808
    %811 = vrot.lane.b32.xlu0 %v809, 4
    %v812 = vpop.permute.xlu0 %811
    %v814 = vadd.f32 %v40, %v812
    %v815 = vadd.f32 %v134, %v812
    %v816 = vadd.f32 %v41, %v812
    %v817 = vadd.f32 %v135, %v812
    %v818 = vadd.f32 %v42, %v812
    %v819 = vadd.f32 %v136, %v812
    %v826 = vrot.slane %v814, 1
    %v827 = vrot.slane %v816, 1
    %v828 = vsel %vm61, %v826, %v827
    %v829 = vrot.slane %v815, 1
    %v830 = vrot.slane %v817, 1
    %v831 = vsel %vm61, %v829, %v830
    %v832 = vrot.slane %v818, 1
    %v833 = vsel %vm61, %v827, %v832
    %v834 = vrot.slane %v819, 1
    %v835 = vsel %vm61, %v830, %v834
    %836 = vrot.lane.b32.xlu0 %v828, 124
    %v837 = vpop.permute.xlu0 %836
    %838 = vrot.lane.b32.xlu0 %v831, 124
    %v839 = vpop.permute.xlu0 %838
    %840 = vrot.lane.b32.xlu0 %v833, 124
    %v841 = vpop.permute.xlu0 %840
    %842 = vrot.lane.b32.xlu0 %v835, 124
    %v843 = vpop.permute.xlu0 %842
    %v844 = vsel %vm798, %v837, %v839
    %v845 = vsel %vm798, %v841, %v843
    %v848 = vmin.f32 %v803, %v844
    %v849 = vmin.f32 %v804, %v845
    %v850 = vld [vmem:[#allocation2 + $0xe] sm:$0x1]
    %v851 = vlaneseq
    %v852 = vshrl.u32 %v851, 7
    %v853 = vsub.s32 0, %v852
    %v854 = vrot.slane %v850, %v853
    %856 = vrot.lane.b32.xlu0 %v854, 4
    %v857 = vpop.permute.xlu0 %856
    %v859 = vadd.f32 %v40, %v857
    %v860 = vadd.f32 %v134, %v857
    %v861 = vadd.f32 %v41, %v857
    %v862 = vadd.f32 %v135, %v857
    %v863 = vadd.f32 %v42, %v857
    %v864 = vadd.f32 %v136, %v857
    %v871 = vrot.slane %v859, 2
    %v872 = vrot.slane %v861, 2
    %v873 = vsel %vm82, %v871, %v872
    %v874 = vrot.slane %v860, 2
    %v875 = vrot.slane %v862, 2
    %v876 = vsel %vm82, %v874, %v875
    %v877 = vrot.slane %v863, 2
    %v878 = vsel %vm82, %v872, %v877
    %v879 = vrot.slane %v864, 2
    %v880 = vsel %vm82, %v875, %v879
    %881 = vrot.lane.b32.xlu0 %v873, 124
    %v882 = vpop.permute.xlu0 %881
    %883 = vrot.lane.b32.xlu0 %v876, 124
    %v884 = vpop.permute.xlu0 %883
    %885 = vrot.lane.b32.xlu0 %v878, 124
    %v886 = vpop.permute.xlu0 %885
    %887 = vrot.lane.b32.xlu0 %v880, 124
    %v888 = vpop.permute.xlu0 %887
    %v889 = vsel %vm798, %v882, %v884
    %v890 = vsel %vm798, %v886, %v888
    %v893 = vmin.f32 %v848, %v889
    %v894 = vmin.f32 %v849, %v890
    %v895 = vld [vmem:[#allocation2 + $0x13] sm:$0x1]
    %v896 = vlaneseq
    %v897 = vshrl.u32 %v896, 7
    %v898 = vsub.s32 0, %v897
    %v899 = vrot.slane %v895, %v898
    %901 = vrot.lane.b32.xlu0 %v899, 4
    %v902 = vpop.permute.xlu0 %901
    %v904 = vadd.f32 %v40, %v902
    %v905 = vadd.f32 %v134, %v902
    %v906 = vadd.f32 %v41, %v902
    %v907 = vadd.f32 %v135, %v902
    %v908 = vadd.f32 %v42, %v902
    %v909 = vadd.f32 %v136, %v902
    %v916 = vrot.slane %v904, 3
    %v917 = vrot.slane %v906, 3
    %v918 = vsel %vm103, %v916, %v917
    %v919 = vrot.slane %v905, 3
    %v920 = vrot.slane %v907, 3
    %v921 = vsel %vm103, %v919, %v920
    %v922 = vrot.slane %v908, 3
    %v923 = vsel %vm103, %v917, %v922
    %v924 = vrot.slane %v909, 3
    %v925 = vsel %vm103, %v920, %v924
    %926 = vrot.lane.b32.xlu0 %v918, 124
    %v927 = vpop.permute.xlu0 %926
    %928 = vrot.lane.b32.xlu0 %v921, 124
    %v929 = vpop.permute.xlu0 %928
    %930 = vrot.lane.b32.xlu0 %v923, 124
    %v931 = vpop.permute.xlu0 %930
    %932 = vrot.lane.b32.xlu0 %v925, 124
    %v933 = vpop.permute.xlu0 %932
    %v934 = vsel %vm798, %v927, %v929
    %v935 = vsel %vm798, %v931, %v933
    %v938 = vmin.f32 %v893, %v934
    %v939 = vmin.f32 %v894, %v935
    %v940 = vld [vmem:[#allocation2 + $0x18] sm:$0x1]
    %v941 = vlaneseq
    %v942 = vshrl.u32 %v941, 7
    %v943 = vsub.s32 0, %v942
    %v944 = vrot.slane %v940, %v943
    %946 = vrot.lane.b32.xlu0 %v944, 4
    %v947 = vpop.permute.xlu0 %946
    %v949 = vadd.f32 %v40, %v947
    %v950 = vadd.f32 %v134, %v947
    %v951 = vadd.f32 %v41, %v947
    %v952 = vadd.f32 %v135, %v947
    %v953 = vadd.f32 %v42, %v947
    %v954 = vadd.f32 %v136, %v947
    %v961 = vrot.slane %v949, 4
    %v962 = vrot.slane %v951, 4
    %v963 = vsel %vm124, %v961, %v962
    %v964 = vrot.slane %v950, 4
    %v965 = vrot.slane %v952, 4
    %v966 = vsel %vm124, %v964, %v965
    %v967 = vrot.slane %v953, 4
    %v968 = vsel %vm124, %v962, %v967
    %v969 = vrot.slane %v954, 4
    %v970 = vsel %vm124, %v965, %v969
    %971 = vrot.lane.b32.xlu0 %v963, 124
    %v972 = vpop.permute.xlu0 %971
    %973 = vrot.lane.b32.xlu0 %v966, 124
    %v974 = vpop.permute.xlu0 %973
    %975 = vrot.lane.b32.xlu0 %v968, 124
    %v976 = vpop.permute.xlu0 %975
    %977 = vrot.lane.b32.xlu0 %v970, 124
    %v978 = vpop.permute.xlu0 %977
    %v979 = vsel %vm798, %v972, %v974
    %v980 = vsel %vm798, %v976, %v978
    %v983 = vmin.f32 %v938, %v979
    %v984 = vmin.f32 %v939, %v980
    %985 = vst [vmem:[#allocation7] sm:$0xff] %v983
    %986 = vst [vmem:[#allocation7 + $0x8] sm:$0xff] %v984
    %s987 = scalar_lea.vmem [#allocation5], 48
    %v988 = vld [vmem:[%s987] sm:$0xff]
    %v989 = vld [vmem:[%s987 + $0x10] sm:$0xff]
    %v990 = vld [vmem:[%s987 + $0x20] sm:$0xf]
    %v991 = vld [vmem:[#allocation2] sm:$0x1]
    %v992 = vlaneseq
    %v993 = vshrl.u32 %v992, 7
    %v994 = vsub.s32 0, %v993
    %v995 = vrot.slane %v991, %v994
    %v996 = vadd.f32 %v988, %v995
    %v997 = vadd.f32 %v989, %v995
    %v998 = vld [vmem:[#allocation2 + $0x5] sm:$0x1]
    %v999 = vlaneseq
    %v1000 = vshrl.u32 %v999, 7
    %v1001 = vsub.s32 0, %v1000
    %v1002 = vrot.slane %v998, %v1001
    %v1003 = vadd.f32 %v988, %v1002
    %v1004 = vadd.f32 %v989, %v1002
    %v1005 = vadd.f32 %v990, %v1002
    %v1009 = vrot.slane %v1003, 1
    %v1010 = vrot.slane %v1004, 1
    %v1011 = vsel %vm61, %v1009, %v1010
    %v1012 = vrot.slane %v1005, 1
    %v1013 = vsel %vm61, %v1010, %v1012
    %v1016 = vmin.f32 %v996, %v1011
    %v1017 = vmin.f32 %v997, %v1013
    %v1018 = vld [vmem:[#allocation2 + $0xa] sm:$0x1]
    %v1019 = vlaneseq
    %v1020 = vshrl.u32 %v1019, 7
    %v1021 = vsub.s32 0, %v1020
    %v1022 = vrot.slane %v1018, %v1021
    %v1023 = vadd.f32 %v988, %v1022
    %v1024 = vadd.f32 %v989, %v1022
    %v1025 = vadd.f32 %v990, %v1022
    %v1029 = vrot.slane %v1023, 2
    %v1030 = vrot.slane %v1024, 2
    %v1031 = vsel %vm82, %v1029, %v1030
    %v1032 = vrot.slane %v1025, 2
    %v1033 = vsel %vm82, %v1030, %v1032
    %v1036 = vmin.f32 %v1016, %v1031
    %v1037 = vmin.f32 %v1017, %v1033
    %v1038 = vld [vmem:[#allocation2 + $0xf] sm:$0x1]
    %v1039 = vlaneseq
    %v1040 = vshrl.u32 %v1039, 7
    %v1041 = vsub.s32 0, %v1040
    %v1042 = vrot.slane %v1038, %v1041
    %v1043 = vadd.f32 %v988, %v1042
    %v1044 = vadd.f32 %v989, %v1042
    %v1045 = vadd.f32 %v990, %v1042
    %v1049 = vrot.slane %v1043, 3
    %v1050 = vrot.slane %v1044, 3
    %v1051 = vsel %vm103, %v1049, %v1050
    %v1052 = vrot.slane %v1045, 3
    %v1053 = vsel %vm103, %v1050, %v1052
    %v1056 = vmin.f32 %v1036, %v1051
    %v1057 = vmin.f32 %v1037, %v1053
    %v1058 = vld [vmem:[#allocation2 + $0x14] sm:$0x1]
    %v1059 = vlaneseq
    %v1060 = vshrl.u32 %v1059, 7
    %v1061 = vsub.s32 0, %v1060
    %v1062 = vrot.slane %v1058, %v1061
    %v1063 = vadd.f32 %v988, %v1062
    %v1064 = vadd.f32 %v989, %v1062
    %v1065 = vadd.f32 %v990, %v1062
    %v1069 = vrot.slane %v1063, 4
    %v1070 = vrot.slane %v1064, 4
    %v1071 = vsel %vm124, %v1069, %v1070
    %v1072 = vrot.slane %v1065, 4
    %v1073 = vsel %vm124, %v1070, %v1072
    %v1076 = vmin.f32 %v1056, %v1071
    %v1077 = vmin.f32 %v1057, %v1073
    %v1078 = vld [vmem:[%s987 + $0x8] sm:$0xff]
    %v1079 = vld [vmem:[%s987 + $0x18] sm:$0xff]
    %v1080 = vld [vmem:[%s987 + $0x28] sm:$0xf]
    %v1081 = vld [vmem:[#allocation2 + $0x1] sm:$0x1]
    %v1082 = vlaneseq
    %v1083 = vshrl.u32 %v1082, 7
    %v1084 = vsub.s32 0, %v1083
    %v1085 = vrot.slane %v1081, %v1084
    %1087 = vrot.lane.b32.xlu0 %v1085, 1
    %v1088 = vpop.permute.xlu0 %1087
    %v1090 = vadd.f32 %v988, %v1088
    %v1091 = vadd.f32 %v1078, %v1088
    %v1092 = vadd.f32 %v989, %v1088
    %v1093 = vadd.f32 %v1079, %v1088
    %1098 = vrot.lane.b32.xlu0 %v1090, 127
    %v1099 = vpop.permute.xlu0 %1098
    %1100 = vrot.lane.b32.xlu0 %v1091, 127
    %v1101 = vpop.permute.xlu0 %1100
    %1102 = vrot.lane.b32.xlu0 %v1092, 127
    %v1103 = vpop.permute.xlu0 %1102
    %1104 = vrot.lane.b32.xlu0 %v1093, 127
    %v1105 = vpop.permute.xlu0 %1104
    %v1106 = vsel %vm162, %v1099, %v1101
    %v1107 = vsel %vm162, %v1103, %v1105
    %v1110 = vmin.f32 %v1076, %v1106
    %v1111 = vmin.f32 %v1077, %v1107
    %v1112 = vld [vmem:[#allocation2 + $0x6] sm:$0x1]
    %v1113 = vlaneseq
    %v1114 = vshrl.u32 %v1113, 7
    %v1115 = vsub.s32 0, %v1114
    %v1116 = vrot.slane %v1112, %v1115
    %1118 = vrot.lane.b32.xlu0 %v1116, 1
    %v1119 = vpop.permute.xlu0 %1118
    %v1121 = vadd.f32 %v988, %v1119
    %v1122 = vadd.f32 %v1078, %v1119
    %v1123 = vadd.f32 %v989, %v1119
    %v1124 = vadd.f32 %v1079, %v1119
    %v1125 = vadd.f32 %v990, %v1119
    %v1126 = vadd.f32 %v1080, %v1119
    %v1133 = vrot.slane %v1121, 1
    %v1134 = vrot.slane %v1123, 1
    %v1135 = vsel %vm61, %v1133, %v1134
    %v1136 = vrot.slane %v1122, 1
    %v1137 = vrot.slane %v1124, 1
    %v1138 = vsel %vm61, %v1136, %v1137
    %v1139 = vrot.slane %v1125, 1
    %v1140 = vsel %vm61, %v1134, %v1139
    %v1141 = vrot.slane %v1126, 1
    %v1142 = vsel %vm61, %v1137, %v1141
    %1143 = vrot.lane.b32.xlu0 %v1135, 127
    %v1144 = vpop.permute.xlu0 %1143
    %1145 = vrot.lane.b32.xlu0 %v1138, 127
    %v1146 = vpop.permute.xlu0 %1145
    %1147 = vrot.lane.b32.xlu0 %v1140, 127
    %v1148 = vpop.permute.xlu0 %1147
    %1149 = vrot.lane.b32.xlu0 %v1142, 127
    %v1150 = vpop.permute.xlu0 %1149
    %v1151 = vsel %vm162, %v1144, %v1146
    %v1152 = vsel %vm162, %v1148, %v1150
    %v1155 = vmin.f32 %v1110, %v1151
    %v1156 = vmin.f32 %v1111, %v1152
    %v1157 = vld [vmem:[#allocation2 + $0xb] sm:$0x1]
    %v1158 = vlaneseq
    %v1159 = vshrl.u32 %v1158, 7
    %v1160 = vsub.s32 0, %v1159
    %v1161 = vrot.slane %v1157, %v1160
    %1163 = vrot.lane.b32.xlu0 %v1161, 1
    %v1164 = vpop.permute.xlu0 %1163
    %v1166 = vadd.f32 %v988, %v1164
    %v1167 = vadd.f32 %v1078, %v1164
    %v1168 = vadd.f32 %v989, %v1164
    %v1169 = vadd.f32 %v1079, %v1164
    %v1170 = vadd.f32 %v990, %v1164
    %v1171 = vadd.f32 %v1080, %v1164
    %v1178 = vrot.slane %v1166, 2
    %v1179 = vrot.slane %v1168, 2
    %v1180 = vsel %vm82, %v1178, %v1179
    %v1181 = vrot.slane %v1167, 2
    %v1182 = vrot.slane %v1169, 2
    %v1183 = vsel %vm82, %v1181, %v1182
    %v1184 = vrot.slane %v1170, 2
    %v1185 = vsel %vm82, %v1179, %v1184
    %v1186 = vrot.slane %v1171, 2
    %v1187 = vsel %vm82, %v1182, %v1186
    %1188 = vrot.lane.b32.xlu0 %v1180, 127
    %v1189 = vpop.permute.xlu0 %1188
    %1190 = vrot.lane.b32.xlu0 %v1183, 127
    %v1191 = vpop.permute.xlu0 %1190
    %1192 = vrot.lane.b32.xlu0 %v1185, 127
    %v1193 = vpop.permute.xlu0 %1192
    %1194 = vrot.lane.b32.xlu0 %v1187, 127
    %v1195 = vpop.permute.xlu0 %1194
    %v1196 = vsel %vm162, %v1189, %v1191
    %v1197 = vsel %vm162, %v1193, %v1195
    %v1200 = vmin.f32 %v1155, %v1196
    %v1201 = vmin.f32 %v1156, %v1197
    %v1202 = vld [vmem:[#allocation2 + $0x10] sm:$0x1]
    %v1203 = vlaneseq
    %v1204 = vshrl.u32 %v1203, 7
    %v1205 = vsub.s32 0, %v1204
    %v1206 = vrot.slane %v1202, %v1205
    %1208 = vrot.lane.b32.xlu0 %v1206, 1
    %v1209 = vpop.permute.xlu0 %1208
    %v1211 = vadd.f32 %v988, %v1209
    %v1212 = vadd.f32 %v1078, %v1209
    %v1213 = vadd.f32 %v989, %v1209
    %v1214 = vadd.f32 %v1079, %v1209
    %v1215 = vadd.f32 %v990, %v1209
    %v1216 = vadd.f32 %v1080, %v1209
    %v1223 = vrot.slane %v1211, 3
    %v1224 = vrot.slane %v1213, 3
    %v1225 = vsel %vm103, %v1223, %v1224
    %v1226 = vrot.slane %v1212, 3
    %v1227 = vrot.slane %v1214, 3
    %v1228 = vsel %vm103, %v1226, %v1227
    %v1229 = vrot.slane %v1215, 3
    %v1230 = vsel %vm103, %v1224, %v1229
    %v1231 = vrot.slane %v1216, 3
    %v1232 = vsel %vm103, %v1227, %v1231
    %1233 = vrot.lane.b32.xlu0 %v1225, 127
    %v1234 = vpop.permute.xlu0 %1233
    %1235 = vrot.lane.b32.xlu0 %v1228, 127
    %v1236 = vpop.permute.xlu0 %1235
    %1237 = vrot.lane.b32.xlu0 %v1230, 127
    %v1238 = vpop.permute.xlu0 %1237
    %1239 = vrot.lane.b32.xlu0 %v1232, 127
    %v1240 = vpop.permute.xlu0 %1239
    %v1241 = vsel %vm162, %v1234, %v1236
    %v1242 = vsel %vm162, %v1238, %v1240
    %v1245 = vmin.f32 %v1200, %v1241
    %v1246 = vmin.f32 %v1201, %v1242
    %v1247 = vld [vmem:[#allocation2 + $0x15] sm:$0x1]
    %v1248 = vlaneseq
    %v1249 = vshrl.u32 %v1248, 7
    %v1250 = vsub.s32 0, %v1249
    %v1251 = vrot.slane %v1247, %v1250
    %1253 = vrot.lane.b32.xlu0 %v1251, 1
    %v1254 = vpop.permute.xlu0 %1253
    %v1256 = vadd.f32 %v988, %v1254
    %v1257 = vadd.f32 %v1078, %v1254
    %v1258 = vadd.f32 %v989, %v1254
    %v1259 = vadd.f32 %v1079, %v1254
    %v1260 = vadd.f32 %v990, %v1254
    %v1261 = vadd.f32 %v1080, %v1254
    %v1268 = vrot.slane %v1256, 4
    %v1269 = vrot.slane %v1258, 4
    %v1270 = vsel %vm124, %v1268, %v1269
    %v1271 = vrot.slane %v1257, 4
    %v1272 = vrot.slane %v1259, 4
    %v1273 = vsel %vm124, %v1271, %v1272
    %v1274 = vrot.slane %v1260, 4
    %v1275 = vsel %vm124, %v1269, %v1274
    %v1276 = vrot.slane %v1261, 4
    %v1277 = vsel %vm124, %v1272, %v1276
    %1278 = vrot.lane.b32.xlu0 %v1270, 127
    %v1279 = vpop.permute.xlu0 %1278
    %1280 = vrot.lane.b32.xlu0 %v1273, 127
    %v1281 = vpop.permute.xlu0 %1280
    %1282 = vrot.lane.b32.xlu0 %v1275, 127
    %v1283 = vpop.permute.xlu0 %1282
    %1284 = vrot.lane.b32.xlu0 %v1277, 127
    %v1285 = vpop.permute.xlu0 %1284
    %v1286 = vsel %vm162, %v1279, %v1281
    %v1287 = vsel %vm162, %v1283, %v1285
    %v1290 = vmin.f32 %v1245, %v1286
    %v1291 = vmin.f32 %v1246, %v1287
    %v1292 = vld [vmem:[#allocation2 + $0x2] sm:$0x1]
    %v1293 = vlaneseq
    %v1294 = vshrl.u32 %v1293, 7
    %v1295 = vsub.s32 0, %v1294
    %v1296 = vrot.slane %v1292, %v1295
    %1298 = vrot.lane.b32.xlu0 %v1296, 2
    %v1299 = vpop.permute.xlu0 %1298
    %v1301 = vadd.f32 %v988, %v1299
    %v1302 = vadd.f32 %v1078, %v1299
    %v1303 = vadd.f32 %v989, %v1299
    %v1304 = vadd.f32 %v1079, %v1299
    %1309 = vrot.lane.b32.xlu0 %v1301, 126
    %v1310 = vpop.permute.xlu0 %1309
    %1311 = vrot.lane.b32.xlu0 %v1302, 126
    %v1312 = vpop.permute.xlu0 %1311
    %1313 = vrot.lane.b32.xlu0 %v1303, 126
    %v1314 = vpop.permute.xlu0 %1313
    %1315 = vrot.lane.b32.xlu0 %v1304, 126
    %v1316 = vpop.permute.xlu0 %1315
    %v1317 = vsel %vm374, %v1310, %v1312
    %v1318 = vsel %vm374, %v1314, %v1316
    %v1321 = vmin.f32 %v1290, %v1317
    %v1322 = vmin.f32 %v1291, %v1318
    %v1323 = vld [vmem:[#allocation2 + $0x7] sm:$0x1]
    %v1324 = vlaneseq
    %v1325 = vshrl.u32 %v1324, 7
    %v1326 = vsub.s32 0, %v1325
    %v1327 = vrot.slane %v1323, %v1326
    %1329 = vrot.lane.b32.xlu0 %v1327, 2
    %v1330 = vpop.permute.xlu0 %1329
    %v1332 = vadd.f32 %v988, %v1330
    %v1333 = vadd.f32 %v1078, %v1330
    %v1334 = vadd.f32 %v989, %v1330
    %v1335 = vadd.f32 %v1079, %v1330
    %v1336 = vadd.f32 %v990, %v1330
    %v1337 = vadd.f32 %v1080, %v1330
    %v1344 = vrot.slane %v1332, 1
    %v1345 = vrot.slane %v1334, 1
    %v1346 = vsel %vm61, %v1344, %v1345
    %v1347 = vrot.slane %v1333, 1
    %v1348 = vrot.slane %v1335, 1
    %v1349 = vsel %vm61, %v1347, %v1348
    %v1350 = vrot.slane %v1336, 1
    %v1351 = vsel %vm61, %v1345, %v1350
    %v1352 = vrot.slane %v1337, 1
    %v1353 = vsel %vm61, %v1348, %v1352
    %1354 = vrot.lane.b32.xlu0 %v1346, 126
    %v1355 = vpop.permute.xlu0 %1354
    %1356 = vrot.lane.b32.xlu0 %v1349, 126
    %v1357 = vpop.permute.xlu0 %1356
    %1358 = vrot.lane.b32.xlu0 %v1351, 126
    %v1359 = vpop.permute.xlu0 %1358
    %1360 = vrot.lane.b32.xlu0 %v1353, 126
    %v1361 = vpop.permute.xlu0 %1360
    %v1362 = vsel %vm374, %v1355, %v1357
    %v1363 = vsel %vm374, %v1359, %v1361
    %v1366 = vmin.f32 %v1321, %v1362
    %v1367 = vmin.f32 %v1322, %v1363
    %v1368 = vld [vmem:[#allocation2 + $0xc] sm:$0x1]
    %v1369 = vlaneseq
    %v1370 = vshrl.u32 %v1369, 7
    %v1371 = vsub.s32 0, %v1370
    %v1372 = vrot.slane %v1368, %v1371
    %1374 = vrot.lane.b32.xlu0 %v1372, 2
    %v1375 = vpop.permute.xlu0 %1374
    %v1377 = vadd.f32 %v988, %v1375
    %v1378 = vadd.f32 %v1078, %v1375
    %v1379 = vadd.f32 %v989, %v1375
    %v1380 = vadd.f32 %v1079, %v1375
    %v1381 = vadd.f32 %v990, %v1375
    %v1382 = vadd.f32 %v1080, %v1375
    %v1389 = vrot.slane %v1377, 2
    %v1390 = vrot.slane %v1379, 2
    %v1391 = vsel %vm82, %v1389, %v1390
    %v1392 = vrot.slane %v1378, 2
    %v1393 = vrot.slane %v1380, 2
    %v1394 = vsel %vm82, %v1392, %v1393
    %v1395 = vrot.slane %v1381, 2
    %v1396 = vsel %vm82, %v1390, %v1395
    %v1397 = vrot.slane %v1382, 2
    %v1398 = vsel %vm82, %v1393, %v1397
    %1399 = vrot.lane.b32.xlu0 %v1391, 126
    %v1400 = vpop.permute.xlu0 %1399
    %1401 = vrot.lane.b32.xlu0 %v1394, 126
    %v1402 = vpop.permute.xlu0 %1401
    %1403 = vrot.lane.b32.xlu0 %v1396, 126
    %v1404 = vpop.permute.xlu0 %1403
    %1405 = vrot.lane.b32.xlu0 %v1398, 126
    %v1406 = vpop.permute.xlu0 %1405
    %v1407 = vsel %vm374, %v1400, %v1402
    %v1408 = vsel %vm374, %v1404, %v1406
    %v1411 = vmin.f32 %v1366, %v1407
    %v1412 = vmin.f32 %v1367, %v1408
    %v1413 = vld [vmem:[#allocation2 + $0x11] sm:$0x1]
    %v1414 = vlaneseq
    %v1415 = vshrl.u32 %v1414, 7
    %v1416 = vsub.s32 0, %v1415
    %v1417 = vrot.slane %v1413, %v1416
    %1419 = vrot.lane.b32.xlu0 %v1417, 2
    %v1420 = vpop.permute.xlu0 %1419
    %v1422 = vadd.f32 %v988, %v1420
    %v1423 = vadd.f32 %v1078, %v1420
    %v1424 = vadd.f32 %v989, %v1420
    %v1425 = vadd.f32 %v1079, %v1420
    %v1426 = vadd.f32 %v990, %v1420
    %v1427 = vadd.f32 %v1080, %v1420
    %v1434 = vrot.slane %v1422, 3
    %v1435 = vrot.slane %v1424, 3
    %v1436 = vsel %vm103, %v1434, %v1435
    %v1437 = vrot.slane %v1423, 3
    %v1438 = vrot.slane %v1425, 3
    %v1439 = vsel %vm103, %v1437, %v1438
    %v1440 = vrot.slane %v1426, 3
    %v1441 = vsel %vm103, %v1435, %v1440
    %v1442 = vrot.slane %v1427, 3
    %v1443 = vsel %vm103, %v1438, %v1442
    %1444 = vrot.lane.b32.xlu0 %v1436, 126
    %v1445 = vpop.permute.xlu0 %1444
    %1446 = vrot.lane.b32.xlu0 %v1439, 126
    %v1447 = vpop.permute.xlu0 %1446
    %1448 = vrot.lane.b32.xlu0 %v1441, 126
    %v1449 = vpop.permute.xlu0 %1448
    %1450 = vrot.lane.b32.xlu0 %v1443, 126
    %v1451 = vpop.permute.xlu0 %1450
    %v1452 = vsel %vm374, %v1445, %v1447
    %v1453 = vsel %vm374, %v1449, %v1451
    %v1456 = vmin.f32 %v1411, %v1452
    %v1457 = vmin.f32 %v1412, %v1453
    %v1458 = vld [vmem:[#allocation2 + $0x16] sm:$0x1]
    %v1459 = vlaneseq
    %v1460 = vshrl.u32 %v1459, 7
    %v1461 = vsub.s32 0, %v1460
    %v1462 = vrot.slane %v1458, %v1461
    %1464 = vrot.lane.b32.xlu0 %v1462, 2
    %v1465 = vpop.permute.xlu0 %1464
    %v1467 = vadd.f32 %v988, %v1465
    %v1468 = vadd.f32 %v1078, %v1465
    %v1469 = vadd.f32 %v989, %v1465
    %v1470 = vadd.f32 %v1079, %v1465
    %v1471 = vadd.f32 %v990, %v1465
    %v1472 = vadd.f32 %v1080, %v1465
    %v1479 = vrot.slane %v1467, 4
    %v1480 = vrot.slane %v1469, 4
    %v1481 = vsel %vm124, %v1479, %v1480
    %v1482 = vrot.slane %v1468, 4
    %v1483 = vrot.slane %v1470, 4
    %v1484 = vsel %vm124, %v1482, %v1483
    %v1485 = vrot.slane %v1471, 4
    %v1486 = vsel %vm124, %v1480, %v1485
    %v1487 = vrot.slane %v1472, 4
    %v1488 = vsel %vm124, %v1483, %v1487
    %1489 = vrot.lane.b32.xlu0 %v1481, 126
    %v1490 = vpop.permute.xlu0 %1489
    %1491 = vrot.lane.b32.xlu0 %v1484, 126
    %v1492 = vpop.permute.xlu0 %1491
    %1493 = vrot.lane.b32.xlu0 %v1486, 126
    %v1494 = vpop.permute.xlu0 %1493
    %1495 = vrot.lane.b32.xlu0 %v1488, 126
    %v1496 = vpop.permute.xlu0 %1495
    %v1497 = vsel %vm374, %v1490, %v1492
    %v1498 = vsel %vm374, %v1494, %v1496
    %v1501 = vmin.f32 %v1456, %v1497
    %v1502 = vmin.f32 %v1457, %v1498
    %v1503 = vld [vmem:[#allocation2 + $0x3] sm:$0x1]
    %v1504 = vlaneseq
    %v1505 = vshrl.u32 %v1504, 7
    %v1506 = vsub.s32 0, %v1505
    %v1507 = vrot.slane %v1503, %v1506
    %1509 = vrot.lane.b32.xlu0 %v1507, 3
    %v1510 = vpop.permute.xlu0 %1509
    %v1512 = vadd.f32 %v988, %v1510
    %v1513 = vadd.f32 %v1078, %v1510
    %v1514 = vadd.f32 %v989, %v1510
    %v1515 = vadd.f32 %v1079, %v1510
    %1520 = vrot.lane.b32.xlu0 %v1512, 125
    %v1521 = vpop.permute.xlu0 %1520
    %1522 = vrot.lane.b32.xlu0 %v1513, 125
    %v1523 = vpop.permute.xlu0 %1522
    %1524 = vrot.lane.b32.xlu0 %v1514, 125
    %v1525 = vpop.permute.xlu0 %1524
    %1526 = vrot.lane.b32.xlu0 %v1515, 125
    %v1527 = vpop.permute.xlu0 %1526
    %v1528 = vsel %vm586, %v1521, %v1523
    %v1529 = vsel %vm586, %v1525, %v1527
    %v1532 = vmin.f32 %v1501, %v1528
    %v1533 = vmin.f32 %v1502, %v1529
    %v1534 = vld [vmem:[#allocation2 + $0x8] sm:$0x1]
    %v1535 = vlaneseq
    %v1536 = vshrl.u32 %v1535, 7
    %v1537 = vsub.s32 0, %v1536
    %v1538 = vrot.slane %v1534, %v1537
    %1540 = vrot.lane.b32.xlu0 %v1538, 3
    %v1541 = vpop.permute.xlu0 %1540
    %v1543 = vadd.f32 %v988, %v1541
    %v1544 = vadd.f32 %v1078, %v1541
    %v1545 = vadd.f32 %v989, %v1541
    %v1546 = vadd.f32 %v1079, %v1541
    %v1547 = vadd.f32 %v990, %v1541
    %v1548 = vadd.f32 %v1080, %v1541
    %v1555 = vrot.slane %v1543, 1
    %v1556 = vrot.slane %v1545, 1
    %v1557 = vsel %vm61, %v1555, %v1556
    %v1558 = vrot.slane %v1544, 1
    %v1559 = vrot.slane %v1546, 1
    %v1560 = vsel %vm61, %v1558, %v1559
    %v1561 = vrot.slane %v1547, 1
    %v1562 = vsel %vm61, %v1556, %v1561
    %v1563 = vrot.slane %v1548, 1
    %v1564 = vsel %vm61, %v1559, %v1563
    %1565 = vrot.lane.b32.xlu0 %v1557, 125
    %v1566 = vpop.permute.xlu0 %1565
    %1567 = vrot.lane.b32.xlu0 %v1560, 125
    %v1568 = vpop.permute.xlu0 %1567
    %1569 = vrot.lane.b32.xlu0 %v1562, 125
    %v1570 = vpop.permute.xlu0 %1569
    %1571 = vrot.lane.b32.xlu0 %v1564, 125
    %v1572 = vpop.permute.xlu0 %1571
    %v1573 = vsel %vm586, %v1566, %v1568
    %v1574 = vsel %vm586, %v1570, %v1572
    %v1577 = vmin.f32 %v1532, %v1573
    %v1578 = vmin.f32 %v1533, %v1574
    %v1579 = vld [vmem:[#allocation2 + $0xd] sm:$0x1]
    %v1580 = vlaneseq
    %v1581 = vshrl.u32 %v1580, 7
    %v1582 = vsub.s32 0, %v1581
    %v1583 = vrot.slane %v1579, %v1582
    %1585 = vrot.lane.b32.xlu0 %v1583, 3
    %v1586 = vpop.permute.xlu0 %1585
    %v1588 = vadd.f32 %v988, %v1586
    %v1589 = vadd.f32 %v1078, %v1586
    %v1590 = vadd.f32 %v989, %v1586
    %v1591 = vadd.f32 %v1079, %v1586
    %v1592 = vadd.f32 %v990, %v1586
    %v1593 = vadd.f32 %v1080, %v1586
    %v1600 = vrot.slane %v1588, 2
    %v1601 = vrot.slane %v1590, 2
    %v1602 = vsel %vm82, %v1600, %v1601
    %v1603 = vrot.slane %v1589, 2
    %v1604 = vrot.slane %v1591, 2
    %v1605 = vsel %vm82, %v1603, %v1604
    %v1606 = vrot.slane %v1592, 2
    %v1607 = vsel %vm82, %v1601, %v1606
    %v1608 = vrot.slane %v1593, 2
    %v1609 = vsel %vm82, %v1604, %v1608
    %1610 = vrot.lane.b32.xlu0 %v1602, 125
    %v1611 = vpop.permute.xlu0 %1610
    %1612 = vrot.lane.b32.xlu0 %v1605, 125
    %v1613 = vpop.permute.xlu0 %1612
    %1614 = vrot.lane.b32.xlu0 %v1607, 125
    %v1615 = vpop.permute.xlu0 %1614
    %1616 = vrot.lane.b32.xlu0 %v1609, 125
    %v1617 = vpop.permute.xlu0 %1616
    %v1618 = vsel %vm586, %v1611, %v1613
    %v1619 = vsel %vm586, %v1615, %v1617
    %v1622 = vmin.f32 %v1577, %v1618
    %v1623 = vmin.f32 %v1578, %v1619
    %v1624 = vld [vmem:[#allocation2 + $0x12] sm:$0x1]
    %v1625 = vlaneseq
    %v1626 = vshrl.u32 %v1625, 7
    %v1627 = vsub.s32 0, %v1626
    %v1628 = vrot.slane %v1624, %v1627
    %1630 = vrot.lane.b32.xlu0 %v1628, 3
    %v1631 = vpop.permute.xlu0 %1630
    %v1633 = vadd.f32 %v988, %v1631
    %v1634 = vadd.f32 %v1078, %v1631
    %v1635 = vadd.f32 %v989, %v1631
    %v1636 = vadd.f32 %v1079, %v1631
    %v1637 = vadd.f32 %v990, %v1631
    %v1638 = vadd.f32 %v1080, %v1631
    %v1645 = vrot.slane %v1633, 3
    %v1646 = vrot.slane %v1635, 3
    %v1647 = vsel %vm103, %v1645, %v1646
    %v1648 = vrot.slane %v1634, 3
    %v1649 = vrot.slane %v1636, 3
    %v1650 = vsel %vm103, %v1648, %v1649
    %v1651 = vrot.slane %v1637, 3
    %v1652 = vsel %vm103, %v1646, %v1651
    %v1653 = vrot.slane %v1638, 3
    %v1654 = vsel %vm103, %v1649, %v1653
    %1655 = vrot.lane.b32.xlu0 %v1647, 125
    %v1656 = vpop.permute.xlu0 %1655
    %1657 = vrot.lane.b32.xlu0 %v1650, 125
    %v1658 = vpop.permute.xlu0 %1657
    %1659 = vrot.lane.b32.xlu0 %v1652, 125
    %v1660 = vpop.permute.xlu0 %1659
    %1661 = vrot.lane.b32.xlu0 %v1654, 125
    %v1662 = vpop.permute.xlu0 %1661
    %v1663 = vsel %vm586, %v1656, %v1658
    %v1664 = vsel %vm586, %v1660, %v1662
    %v1667 = vmin.f32 %v1622, %v1663
    %v1668 = vmin.f32 %v1623, %v1664
    %v1669 = vld [vmem:[#allocation2 + $0x17] sm:$0x1]
    %v1670 = vlaneseq
    %v1671 = vshrl.u32 %v1670, 7
    %v1672 = vsub.s32 0, %v1671
    %v1673 = vrot.slane %v1669, %v1672
    %1675 = vrot.lane.b32.xlu0 %v1673, 3
    %v1676 = vpop.permute.xlu0 %1675
    %v1678 = vadd.f32 %v988, %v1676
    %v1679 = vadd.f32 %v1078, %v1676
    %v1680 = vadd.f32 %v989, %v1676
    %v1681 = vadd.f32 %v1079, %v1676
    %v1682 = vadd.f32 %v990, %v1676
    %v1683 = vadd.f32 %v1080, %v1676
    %v1690 = vrot.slane %v1678, 4
    %v1691 = vrot.slane %v1680, 4
    %v1692 = vsel %vm124, %v1690, %v1691
    %v1693 = vrot.slane %v1679, 4
    %v1694 = vrot.slane %v1681, 4
    %v1695 = vsel %vm124, %v1693, %v1694
    %v1696 = vrot.slane %v1682, 4
    %v1697 = vsel %vm124, %v1691, %v1696
    %v1698 = vrot.slane %v1683, 4
    %v1699 = vsel %vm124, %v1694, %v1698
    %1700 = vrot.lane.b32.xlu0 %v1692, 125
    %v1701 = vpop.permute.xlu0 %1700
    %1702 = vrot.lane.b32.xlu0 %v1695, 125
    %v1703 = vpop.permute.xlu0 %1702
    %1704 = vrot.lane.b32.xlu0 %v1697, 125
    %v1705 = vpop.permute.xlu0 %1704
    %1706 = vrot.lane.b32.xlu0 %v1699, 125
    %v1707 = vpop.permute.xlu0 %1706
    %v1708 = vsel %vm586, %v1701, %v1703
    %v1709 = vsel %vm586, %v1705, %v1707
    %v1712 = vmin.f32 %v1667, %v1708
    %v1713 = vmin.f32 %v1668, %v1709
    %v1714 = vld [vmem:[#allocation2 + $0x4] sm:$0x1]
    %v1715 = vlaneseq
    %v1716 = vshrl.u32 %v1715, 7
    %v1717 = vsub.s32 0, %v1716
    %v1718 = vrot.slane %v1714, %v1717
    %1720 = vrot.lane.b32.xlu0 %v1718, 4
    %v1721 = vpop.permute.xlu0 %1720
    %v1723 = vadd.f32 %v988, %v1721
    %v1724 = vadd.f32 %v1078, %v1721
    %v1725 = vadd.f32 %v989, %v1721
    %v1726 = vadd.f32 %v1079, %v1721
    %1731 = vrot.lane.b32.xlu0 %v1723, 124
    %v1732 = vpop.permute.xlu0 %1731
    %1733 = vrot.lane.b32.xlu0 %v1724, 124
    %v1734 = vpop.permute.xlu0 %1733
    %1735 = vrot.lane.b32.xlu0 %v1725, 124
    %v1736 = vpop.permute.xlu0 %1735
    %1737 = vrot.lane.b32.xlu0 %v1726, 124
    %v1738 = vpop.permute.xlu0 %1737
    %v1739 = vsel %vm798, %v1732, %v1734
    %v1740 = vsel %vm798, %v1736, %v1738
    %v1743 = vmin.f32 %v1712, %v1739
    %v1744 = vmin.f32 %v1713, %v1740
    %v1745 = vld [vmem:[#allocation2 + $0x9] sm:$0x1]
    %v1746 = vlaneseq
    %v1747 = vshrl.u32 %v1746, 7
    %v1748 = vsub.s32 0, %v1747
    %v1749 = vrot.slane %v1745, %v1748
    %1751 = vrot.lane.b32.xlu0 %v1749, 4
    %v1752 = vpop.permute.xlu0 %1751
    %v1754 = vadd.f32 %v988, %v1752
    %v1755 = vadd.f32 %v1078, %v1752
    %v1756 = vadd.f32 %v989, %v1752
    %v1757 = vadd.f32 %v1079, %v1752
    %v1758 = vadd.f32 %v990, %v1752
    %v1759 = vadd.f32 %v1080, %v1752
    %v1766 = vrot.slane %v1754, 1
    %v1767 = vrot.slane %v1756, 1
    %v1768 = vsel %vm61, %v1766, %v1767
    %v1769 = vrot.slane %v1755, 1
    %v1770 = vrot.slane %v1757, 1
    %v1771 = vsel %vm61, %v1769, %v1770
    %v1772 = vrot.slane %v1758, 1
    %v1773 = vsel %vm61, %v1767, %v1772
    %v1774 = vrot.slane %v1759, 1
    %v1775 = vsel %vm61, %v1770, %v1774
    %1776 = vrot.lane.b32.xlu0 %v1768, 124
    %v1777 = vpop.permute.xlu0 %1776
    %1778 = vrot.lane.b32.xlu0 %v1771, 124
    %v1779 = vpop.permute.xlu0 %1778
    %1780 = vrot.lane.b32.xlu0 %v1773, 124
    %v1781 = vpop.permute.xlu0 %1780
    %1782 = vrot.lane.b32.xlu0 %v1775, 124
    %v1783 = vpop.permute.xlu0 %1782
    %v1784 = vsel %vm798, %v1777, %v1779
    %v1785 = vsel %vm798, %v1781, %v1783
    %v1788 = vmin.f32 %v1743, %v1784
    %v1789 = vmin.f32 %v1744, %v1785
    %v1790 = vld [vmem:[#allocation2 + $0xe] sm:$0x1]
    %v1791 = vlaneseq
    %v1792 = vshrl.u32 %v1791, 7
    %v1793 = vsub.s32 0, %v1792
    %v1794 = vrot.slane %v1790, %v1793
    %1796 = vrot.lane.b32.xlu0 %v1794, 4
    %v1797 = vpop.permute.xlu0 %1796
    %v1799 = vadd.f32 %v988, %v1797
    %v1800 = vadd.f32 %v1078, %v1797
    %v1801 = vadd.f32 %v989, %v1797
    %v1802 = vadd.f32 %v1079, %v1797
    %v1803 = vadd.f32 %v990, %v1797
    %v1804 = vadd.f32 %v1080, %v1797
    %v1811 = vrot.slane %v1799, 2
    %v1812 = vrot.slane %v1801, 2
    %v1813 = vsel %vm82, %v1811, %v1812
    %v1814 = vrot.slane %v1800, 2
    %v1815 = vrot.slane %v1802, 2
    %v1816 = vsel %vm82, %v1814, %v1815
    %v1817 = vrot.slane %v1803, 2
    %v1818 = vsel %vm82, %v1812, %v1817
    %v1819 = vrot.slane %v1804, 2
    %v1820 = vsel %vm82, %v1815, %v1819
    %1821 = vrot.lane.b32.xlu0 %v1813, 124
    %v1822 = vpop.permute.xlu0 %1821
    %1823 = vrot.lane.b32.xlu0 %v1816, 124
    %v1824 = vpop.permute.xlu0 %1823
    %1825 = vrot.lane.b32.xlu0 %v1818, 124
    %v1826 = vpop.permute.xlu0 %1825
    %1827 = vrot.lane.b32.xlu0 %v1820, 124
    %v1828 = vpop.permute.xlu0 %1827
    %v1829 = vsel %vm798, %v1822, %v1824
    %v1830 = vsel %vm798, %v1826, %v1828
    %v1833 = vmin.f32 %v1788, %v1829
    %v1834 = vmin.f32 %v1789, %v1830
    %v1835 = vld [vmem:[#allocation2 + $0x13] sm:$0x1]
    %v1836 = vlaneseq
    %v1837 = vshrl.u32 %v1836, 7
    %v1838 = vsub.s32 0, %v1837
    %v1839 = vrot.slane %v1835, %v1838
    %1841 = vrot.lane.b32.xlu0 %v1839, 4
    %v1842 = vpop.permute.xlu0 %1841
    %v1844 = vadd.f32 %v988, %v1842
    %v1845 = vadd.f32 %v1078, %v1842
    %v1846 = vadd.f32 %v989, %v1842
    %v1847 = vadd.f32 %v1079, %v1842
    %v1848 = vadd.f32 %v990, %v1842
    %v1849 = vadd.f32 %v1080, %v1842
    %v1856 = vrot.slane %v1844, 3
    %v1857 = vrot.slane %v1846, 3
    %v1858 = vsel %vm103, %v1856, %v1857
    %v1859 = vrot.slane %v1845, 3
    %v1860 = vrot.slane %v1847, 3
    %v1861 = vsel %vm103, %v1859, %v1860
    %v1862 = vrot.slane %v1848, 3
    %v1863 = vsel %vm103, %v1857, %v1862
    %v1864 = vrot.slane %v1849, 3
    %v1865 = vsel %vm103, %v1860, %v1864
    %1866 = vrot.lane.b32.xlu0 %v1858, 124
    %v1867 = vpop.permute.xlu0 %1866
    %1868 = vrot.lane.b32.xlu0 %v1861, 124
    %v1869 = vpop.permute.xlu0 %1868
    %1870 = vrot.lane.b32.xlu0 %v1863, 124
    %v1871 = vpop.permute.xlu0 %1870
    %1872 = vrot.lane.b32.xlu0 %v1865, 124
    %v1873 = vpop.permute.xlu0 %1872
    %v1874 = vsel %vm798, %v1867, %v1869
    %v1875 = vsel %vm798, %v1871, %v1873
    %v1878 = vmin.f32 %v1833, %v1874
    %v1879 = vmin.f32 %v1834, %v1875
    %v1880 = vld [vmem:[#allocation2 + $0x18] sm:$0x1]
    %v1881 = vlaneseq
    %v1882 = vshrl.u32 %v1881, 7
    %v1883 = vsub.s32 0, %v1882
    %v1884 = vrot.slane %v1880, %v1883
    %1886 = vrot.lane.b32.xlu0 %v1884, 4
    %v1887 = vpop.permute.xlu0 %1886
    %v1889 = vadd.f32 %v988, %v1887
    %v1890 = vadd.f32 %v1078, %v1887
    %v1891 = vadd.f32 %v989, %v1887
    %v1892 = vadd.f32 %v1079, %v1887
    %v1893 = vadd.f32 %v990, %v1887
    %v1894 = vadd.f32 %v1080, %v1887
    %v1901 = vrot.slane %v1889, 4
    %v1902 = vrot.slane %v1891, 4
    %v1903 = vsel %vm124, %v1901, %v1902
    %v1904 = vrot.slane %v1890, 4
    %v1905 = vrot.slane %v1892, 4
    %v1906 = vsel %vm124, %v1904, %v1905
    %v1907 = vrot.slane %v1893, 4
    %v1908 = vsel %vm124, %v1902, %v1907
    %v1909 = vrot.slane %v1894, 4
    %v1910 = vsel %vm124, %v1905, %v1909
    %1911 = vrot.lane.b32.xlu0 %v1903, 124
    %v1912 = vpop.permute.xlu0 %1911
    %1913 = vrot.lane.b32.xlu0 %v1906, 124
    %v1914 = vpop.permute.xlu0 %1913
    %1915 = vrot.lane.b32.xlu0 %v1908, 124
    %v1916 = vpop.permute.xlu0 %1915
    %1917 = vrot.lane.b32.xlu0 %v1910, 124
    %v1918 = vpop.permute.xlu0 %1917
    %v1919 = vsel %vm798, %v1912, %v1914
    %v1920 = vsel %vm798, %v1916, %v1918
    %v1923 = vmin.f32 %v1878, %v1919
    %v1924 = vmin.f32 %v1879, %v1920
    %s1925 = scalar_lea.vmem [#allocation7], 16
    %1926 = vst [vmem:[%s1925] sm:$0xff] %v1923
    %1927 = vst [vmem:[%s1925 + $0x8] sm:$0xff] %v1924
    // Predicated region
    $region18: #{tpu_custom_call.1} parent=1 // pred_check
      _
    $region19: #{tpu_custom_call.1} parent=1 // pred_check_branch
      %1929 = sbr.rel (0) target = $region21
    $region20: #{tpu_custom_call.1} parent=1 // pred_region
      %s1931 = ssub.s32 512, 512
      %1932 = vsyncadd [#allocation4], %s1931
      %s1933 = sshll.u32 [#allocation7], 4
      %s1934 = int_to_ptr.vmem [resolvable:$true] %s1933
      %1939 = dma.vmem_to_hbm [thread:$0]  %s1934, 512, %s2, [#allocation4], 128, 128, 8
    $region21: #{tpu_custom_call.1} parent=1 // pred_fallthru
      _
    // Predicated region
    $region22: #{tpu_custom_call.1} parent=1 // pred_check
      _
    $region23: #{tpu_custom_call.1} parent=1 // pred_check_branch
      %1941 = sbr.rel (0) target = $region25
    $region24: #{tpu_custom_call.1} parent=1 // pred_region
      %1942 = dma.done [#allocation4], 512
    $region25: #{tpu_custom_call.1} parent=1 // pred_fallthru
      _
    %1943 = vsyncpa [#allocation3], 1
    %1944 = vsyncpa [#allocation6], 1
    %1945 = vsyncpa [#allocation4], 1

</llo_original>
